<compile_context>
chip_gen: v7x
topology: tpu7x:2x2x1
jax: 0.10.0
libtpu: 0.0.40
codegen_flags: <defaults>
</compile_context>

<pallas_src>
import functools
import math

import jax
import jax.numpy as jnp
import numpy as np
from jax import lax
from jax.experimental import pallas as pl
from jax.experimental.pallas import tpu as pltpu

_FOLD = 8  # tokens folded per output row (makes the output lane-dense)


def _pick_tile_rows(n_rows):
    """Big tiles to amortize per-step overhead, but keep >=4 grid programs
    when possible so megacore / 2-TC sharding stays useful (review item)."""
    for t in (64, 32, 16, 8):
        if n_rows % t == 0 and n_rows // t >= 4:
            return t
    for t in (64, 32, 16, 8):
        if n_rows % t == 0:
            return t
    return n_rows


def _multihot(idx, v_big, s_factor):
    """idx: (R, C) int32 global row ids -> (R, v_big) f32 with s_factor set
    at each referenced row (s_factor folded in: rides through the MXU)."""
    r, c = idx.shape
    iota = lax.broadcasted_iota(jnp.int32, (r, v_big), 1)
    mh = jnp.zeros((r, v_big), jnp.float32)
    for j in range(c):  # static, small (8*K), unrolled at trace time
        mh = mh + jnp.where(iota == idx[:, j:j + 1], s_factor, 0.0)
    return mh


def _gather_matmul(idx_ref, w_ref, s_factor):
    """Single fused gather: multi-hot @ stacked-table (exact for 0/s rows).
    Note: out-of-range indices yield all-zero rows (divergent from torch,
    which would raise)."""
    mh = _multihot(idx_ref[...], w_ref.shape[0], s_factor)
    # Mosaic dot lowering only supports DEFAULT/HIGHEST; DEFAULT truncates the
    # f32 table to bf16 (lossy), so keep HIGHEST. K-depth is tiny -> cheap.
    return jnp.dot(mh, w_ref[...], preferred_element_type=jnp.float32,
                   precision=lax.Precision.HIGHEST)


def _concat_kernel(idx_ref, w_ref, out_ref, *, s_factor):
    out_ref[...] = _gather_matmul(idx_ref, w_ref, s_factor).astype(out_ref.dtype)


def _sum_ln_kernel(idx_ref, w_ref, avg_ref, gamma_ref, beta_ref, out_ref, *,
                   s_factor, eps):
    acc = _gather_matmul(idx_ref, w_ref, s_factor)   # (R, 8*E): 8 tokens/row
    avg = avg_ref[...]                               # (8E, 8E) block-diag 1/E
    # Per-token segmented statistics without leaving the folded lane-dense
    # layout: mean and E[x^2] broadcast over each token's E-lane segment.
    mean = jnp.dot(acc, avg, preferred_element_type=jnp.float32,
                   precision=lax.Precision.HIGHEST)
    ex2 = jnp.dot(acc * acc, avg, preferred_element_type=jnp.float32,
                  precision=lax.Precision.HIGHEST)
    var = ex2 - mean * mean
    # TODO(synk): robustcode's custom LayerNorm source is not in the snippet;
    # standard biased-variance LN with eps=1e-6 is used here.
    normed = (acc - mean) * lax.rsqrt(var + eps)
    out_ref[...] = (normed * gamma_ref[...] + beta_ref[...]).astype(out_ref.dtype)


def multi_embedding_forward(xs, params, *, mode="concat"):
    """Forward pass of MultiEmbedding.

    xs: single (B, S) int32 array OR list of (B, S) int32 arrays.
    params: dict with 'tables' (list of (V_k, E_k) f32), 's_factor' (float),
            and for mode=='sum' also 'gamma'/'beta' of shape (D,).
    """
    tables = [t.astype(jnp.float32) for t in params["tables"]]
    s_factor = float(params["s_factor"])

    single = not isinstance(xs, (list, tuple))
    if single:
        xs_list = [xs]
        tables = tables[:1]
        mode_eff = "concat"  # module: embeddings[0](x) * s_factor, no norm
    else:
        xs_list = list(xs)
        assert len(xs_list) == len(tables)
        mode_eff = mode

    b, s = xs_list[0].shape
    n = b * s
    k = len(xs_list)
    vocabs = [int(t.shape[0]) for t in tables]
    v_total = sum(vocabs)
    embed_dims = [int(t.shape[1]) for t in tables]

    # ---- stack the K tables into ONE weight matrix (done once per call;
    #      in a real model this is one-time weight preparation) -------------
    if mode_eff == "concat":
        d_out = sum(embed_dims)
        w_stack = jnp.zeros((v_total, d_out), jnp.float32)
        r0 = c0 = 0
        for t in tables:                      # block-diagonal placement
            v, e = t.shape
            w_stack = w_stack.at[r0:r0 + v, c0:c0 + e].set(t)
            r0 += v
            c0 += e
    else:  # 'sum': vertical stack, reduction happens inside the matmul
        d_out = embed_dims[0]
        w_stack = jnp.concatenate(tables, axis=0)           # (v_total, E)

    # 8x block-diagonal replication -> folded, lane-dense output layout.
    w_big = jnp.kron(jnp.eye(_FOLD, dtype=jnp.float32), w_stack)
    v_big = _FOLD * v_total
    d_big = _FOLD * d_out

    # ---- pack all K index streams into one offset int32 array -------------
    row_off = np.concatenate([[0], np.cumsum(vocabs)[:-1]]).astype(np.int32)
    idx = jnp.stack(
        [x.reshape(-1).astype(jnp.int32) + int(row_off[i])
         for i, x in enumerate(xs_list)], axis=-1)           # (N, K)

    # Pad N to a multiple of 8*_FOLD so every block's sublane dim is >= 8.
    n_padded = ((n + 8 * _FOLD - 1) // (8 * _FOLD)) * (8 * _FOLD)
    pad = n_padded - n
    if pad:
        idx = jnp.concatenate([idx, jnp.zeros((pad, k), jnp.int32)], axis=0)
    n_rows = n_padded // _FOLD
    slot_off = (jnp.arange(_FOLD, dtype=jnp.int32) * v_total)[None, :, None]
    idx_f = (idx.reshape(n_rows, _FOLD, k) + slot_off).reshape(n_rows, _FOLD * k)

    tile_r = _pick_tile_rows(n_rows)
    grid = (n_rows // tile_r,)

    idx_spec = pl.BlockSpec((tile_r, _FOLD * k), lambda i: (i, 0))
    w_spec = pl.BlockSpec((v_big, d_big), lambda i: (0, 0))
    out_spec = pl.BlockSpec((tile_r, d_big), lambda i: (i, 0))
    out_shape = jax.ShapeDtypeStruct((n_rows, d_big), jnp.float32)

    # Explicit VMEM budget (review item: v7x has 64 MiB physical, 32 MiB
    # scoped default): double-buffered moving blocks + resident constants,
    # with generous headroom, clamped to a v7x-safe ceiling.
    block_bytes = 4 * (tile_r * _FOLD * k + tile_r * d_big)
    const_bytes = 4 * (v_big * d_big)
    if mode_eff == "sum":
        const_bytes += 4 * (d_big * d_big + 2 * d_big)
    vmem_limit = int(min(max(4 * (2 * block_bytes + 2 * const_bytes), 16 << 20),
                         48 << 20))
    cparams = pltpu.CompilerParams(dimension_semantics=("parallel",),
                                   vmem_limit_bytes=vmem_limit)

    if mode_eff == "concat":
        kernel = functools.partial(_concat_kernel, s_factor=s_factor)
        out = pl.pallas_call(
            kernel, out_shape=out_shape, grid=grid,
            in_specs=[idx_spec, w_spec], out_specs=out_spec,
            compiler_params=cparams,
        )(idx_f, w_big)
    else:
        e = d_out
        avg = jnp.kron(jnp.eye(_FOLD, dtype=jnp.float32),
                       jnp.full((e, e), 1.0 / e, jnp.float32))   # (8E, 8E)
        gamma = jnp.tile(params["gamma"].astype(jnp.float32), _FOLD)
        beta = jnp.tile(params["beta"].astype(jnp.float32), _FOLD)
        kernel = functools.partial(_sum_ln_kernel, s_factor=s_factor, eps=1e-6)
        out = pl.pallas_call(
            kernel, out_shape=out_shape, grid=grid,
            in_specs=[idx_spec, w_spec,
                      pl.BlockSpec((d_big, d_big), lambda i: (0, 0)),
                      pl.BlockSpec((1, d_big), lambda i: (0, 0)),
                      pl.BlockSpec((1, d_big), lambda i: (0, 0))],
            out_specs=out_spec, compiler_params=cparams,
        )(idx_f, w_big, avg, gamma.reshape(1, d_big), beta.reshape(1, d_big))

    # (n_rows, 8*D) and (n_padded, D) share the same row-major HBM layout:
    # the unfold below is free metadata, only the de-pad slice touches data.
    out_flat = out.reshape(n_padded, d_out)
    if pad:
        out_flat = out_flat[:n]
    return out_flat.reshape(b, s, d_out)


def init_multi_embedding(key, d_in_vocabs, d_embedding, *, scaled=False,
                         mode="concat"):
    """Deterministic parameter init matching MultiEmbedding.__init__."""
    factor = len(d_in_vocabs) if mode == "concat" else 1
    e = d_embedding // factor
    keys = jax.random.split(key, len(d_in_vocabs))
    tables = [jax.random.normal(kk, (v, e), jnp.float32)
              for kk, v in zip(keys, d_in_vocabs)]
    s_factor = math.sqrt(d_embedding // len(d_in_vocabs)) if scaled else 1.0
    params = {"tables": tables, "s_factor": s_factor}
    if mode == "sum":
        params["gamma"] = jnp.ones((d_embedding,), jnp.float32)
        params["beta"] = jnp.zeros((d_embedding,), jnp.float32)
    return params


def _ref_forward(xs, params, mode):
    """Pure-JAX reference."""
    tables = params["tables"]
    s = params["s_factor"]
    if not isinstance(xs, (list, tuple)):
        return tables[0][xs] * s
    embs = [t[x] * s for t, x in zip(tables, xs)]
    if mode == "concat":
        return jnp.concatenate(embs, axis=-1)
    res = sum(embs[1:], embs[0])
    mean = jnp.mean(res, axis=-1, keepdims=True)
    var = jnp.mean((res - mean) ** 2, axis=-1, keepdims=True)
    normed = (res - mean) * lax.rsqrt(var + 1e-6)
    return normed * params["gamma"] + params["beta"]


if __name__ == "__main__":
    key = jax.random.PRNGKey(0)
    d_in_vocabs = [11, 7, 5]
    d_embedding = 48
    B, S = 2, 8

    k_p1, k_p2, k_x = jax.random.split(key, 3)
    xs = [jax.random.randint(jax.random.fold_in(k_x, i), (B, S), 0, v,
                             dtype=jnp.int32)
          for i, v in enumerate(d_in_vocabs)]

    # ---- concat mode (scaled) ----
    p_cat = init_multi_embedding(k_p1, d_in_vocabs, d_embedding,
                                 scaled=True, mode="concat")
    out_cat = jax.block_until_ready(
        multi_embedding_forward(xs, p_cat, mode="concat"))
    ref_cat = _ref_forward(xs, p_cat, "concat")
    np.testing.assert_allclose(np.asarray(out_cat), np.asarray(ref_cat),
                               rtol=1e-4, atol=1e-4)
    assert out_cat.shape == (B, S, d_embedding)

    # ---- sum mode (scaled, LayerNorm) ----
    p_sum = init_multi_embedding(k_p2, d_in_vocabs, d_embedding,
                                 scaled=True, mode="sum")
    out_sum = jax.block_until_ready(
        multi_embedding_forward(xs, p_sum, mode="sum"))
    ref_sum = _ref_forward(xs, p_sum, "sum")
    np.testing.assert_allclose(np.asarray(out_sum), np.asarray(ref_sum),
                               rtol=1e-3, atol=1e-3)
    assert out_sum.shape == (B, S, d_embedding)

    # ---- single (non-list) input path ----
    out_single = jax.block_until_ready(
        multi_embedding_forward(xs[0], p_cat, mode="concat"))
    ref_single = _ref_forward(xs[0], p_cat, "concat")
    np.testing.assert_allclose(np.asarray(out_single), np.asarray(ref_single),
                               rtol=1e-4, atol=1e-4)
    assert out_single.shape == (B, S, d_embedding // len(d_in_vocabs))

    # ---- larger shape: exercises multi-program grid + big lane-dense tiles ----
    B2, S2 = 4, 128
    xs_big = [jax.random.randint(jax.random.fold_in(k_x, 100 + i), (B2, S2), 0, v,
                                 dtype=jnp.int32)
              for i, v in enumerate(d_in_vocabs)]
    out_big_c = jax.block_until_ready(
        multi_embedding_forward(xs_big, p_cat, mode="concat"))
    np.testing.assert_allclose(np.asarray(out_big_c),
                               np.asarray(_ref_forward(xs_big, p_cat, "concat")),
                               rtol=1e-4, atol=1e-4)
    out_big_s = jax.block_until_ready(
        multi_embedding_forward(xs_big, p_sum, mode="sum"))
    np.testing.assert_allclose(np.asarray(out_big_s),
                               np.asarray(_ref_forward(xs_big, p_sum, "sum")),
                               rtol=1e-3, atol=1e-3)

    print("KERNEL_OK")
</pallas_src>

<mosaic_0001>
module attributes {stable_mosaic.version = 11 : i64} {
  func.func @_concat_kernel(%arg0: i32, %arg1: memref<8x24xi32, #tpu.memory_space<vmem>>, %arg2: memref<184x384xf32, #tpu.memory_space<vmem>>, %arg3: memref<8x384xf32, #tpu.memory_space<vmem>>) attributes {dimension_semantics = [#tpu.dimension_semantics<parallel>], iteration_bounds = array<i64: 1>, scalar_prefetch = 0 : i64, scratch_operands = 0 : i64, tpu.core_type = #tpu.core_type<tc>, window_params = [{transform_indices = @transform_0, window_bounds = array<i64: 8, 24>}, {pipeline_mode = #tpu.pipeline_mode<synchronous>, transform_indices = @transform_1, window_bounds = array<i64: 184, 384>}, {transform_indices = @transform_2, window_bounds = array<i64: 8, 384>}]} {
    %c0 = arith.constant 0 : index
    %c0_0 = arith.constant 0 : index
    %0 = vector.load %arg1[%c0, %c0_0] : memref<8x24xi32, #tpu.memory_space<vmem>>, vector<8x24xi32>
    %1 = tpu.iota {dimensions = array<i32: 1>} : vector<8x184xi32>
    %cst = arith.constant 0.000000e+00 : f32
    %2 = vector.broadcast %cst : f32 to vector<8x184xf32>
    %3 = vector.extract_strided_slice %0 {offsets = [0, 0], sizes = [8, 1], strides = [1, 1]} : vector<8x24xi32> to vector<8x1xi32>
    %4 = vector.broadcast %3 : vector<8x1xi32> to vector<8x184xi32>
    %5 = arith.cmpi eq, %1, %4 : vector<8x184xi32>
    %cst_1 = arith.constant 4.000000e+00 : f32
    %cst_2 = arith.constant 0.000000e+00 : f32
    %6 = vector.broadcast %cst_1 : f32 to vector<8x184xf32>
    %7 = vector.broadcast %cst_2 : f32 to vector<8x184xf32>
    %8 = arith.select %5, %6, %7 : vector<8x184xi1>, vector<8x184xf32>
    %9 = arith.addf %2, %8 : vector<8x184xf32>
    %10 = vector.extract_strided_slice %0 {offsets = [0, 1], sizes = [8, 1], strides = [1, 1]} : vector<8x24xi32> to vector<8x1xi32>
    %11 = vector.broadcast %10 : vector<8x1xi32> to vector<8x184xi32>
    %12 = arith.cmpi eq, %1, %11 : vector<8x184xi32>
    %cst_3 = arith.constant 4.000000e+00 : f32
    %cst_4 = arith.constant 0.000000e+00 : f32
    %13 = vector.broadcast %cst_3 : f32 to vector<8x184xf32>
    %14 = vector.broadcast %cst_4 : f32 to vector<8x184xf32>
    %15 = arith.select %12, %13, %14 : vector<8x184xi1>, vector<8x184xf32>
    %16 = arith.addf %9, %15 : vector<8x184xf32>
    %17 = vector.extract_strided_slice %0 {offsets = [0, 2], sizes = [8, 1], strides = [1, 1]} : vector<8x24xi32> to vector<8x1xi32>
    %18 = vector.broadcast %17 : vector<8x1xi32> to vector<8x184xi32>
    %19 = arith.cmpi eq, %1, %18 : vector<8x184xi32>
    %cst_5 = arith.constant 4.000000e+00 : f32
    %cst_6 = arith.constant 0.000000e+00 : f32
    %20 = vector.broadcast %cst_5 : f32 to vector<8x184xf32>
    %21 = vector.broadcast %cst_6 : f32 to vector<8x184xf32>
    %22 = arith.select %19, %20, %21 : vector<8x184xi1>, vector<8x184xf32>
    %23 = arith.addf %16, %22 : vector<8x184xf32>
    %24 = vector.extract_strided_slice %0 {offsets = [0, 3], sizes = [8, 1], strides = [1, 1]} : vector<8x24xi32> to vector<8x1xi32>
    %25 = vector.broadcast %24 : vector<8x1xi32> to vector<8x184xi32>
    %26 = arith.cmpi eq, %1, %25 : vector<8x184xi32>
    %cst_7 = arith.constant 4.000000e+00 : f32
    %cst_8 = arith.constant 0.000000e+00 : f32
    %27 = vector.broadcast %cst_7 : f32 to vector<8x184xf32>
    %28 = vector.broadcast %cst_8 : f32 to vector<8x184xf32>
    %29 = arith.select %26, %27, %28 : vector<8x184xi1>, vector<8x184xf32>
    %30 = arith.addf %23, %29 : vector<8x184xf32>
    %31 = vector.extract_strided_slice %0 {offsets = [0, 4], sizes = [8, 1], strides = [1, 1]} : vector<8x24xi32> to vector<8x1xi32>
    %32 = vector.broadcast %31 : vector<8x1xi32> to vector<8x184xi32>
    %33 = arith.cmpi eq, %1, %32 : vector<8x184xi32>
    %cst_9 = arith.constant 4.000000e+00 : f32
    %cst_10 = arith.constant 0.000000e+00 : f32
    %34 = vector.broadcast %cst_9 : f32 to vector<8x184xf32>
    %35 = vector.broadcast %cst_10 : f32 to vector<8x184xf32>
    %36 = arith.select %33, %34, %35 : vector<8x184xi1>, vector<8x184xf32>
    %37 = arith.addf %30, %36 : vector<8x184xf32>
    %38 = vector.extract_strided_slice %0 {offsets = [0, 5], sizes = [8, 1], strides = [1, 1]} : vector<8x24xi32> to vector<8x1xi32>
    %39 = vector.broadcast %38 : vector<8x1xi32> to vector<8x184xi32>
    %40 = arith.cmpi eq, %1, %39 : vector<8x184xi32>
    %cst_11 = arith.constant 4.000000e+00 : f32
    %cst_12 = arith.constant 0.000000e+00 : f32
    %41 = vector.broadcast %cst_11 : f32 to vector<8x184xf32>
    %42 = vector.broadcast %cst_12 : f32 to vector<8x184xf32>
    %43 = arith.select %40, %41, %42 : vector<8x184xi1>, vector<8x184xf32>
    %44 = arith.addf %37, %43 : vector<8x184xf32>
    %45 = vector.extract_strided_slice %0 {offsets = [0, 6], sizes = [8, 1], strides = [1, 1]} : vector<8x24xi32> to vector<8x1xi32>
    %46 = vector.broadcast %45 : vector<8x1xi32> to vector<8x184xi32>
    %47 = arith.cmpi eq, %1, %46 : vector<8x184xi32>
    %cst_13 = arith.constant 4.000000e+00 : f32
    %cst_14 = arith.constant 0.000000e+00 : f32
    %48 = vector.broadcast %cst_13 : f32 to vector<8x184xf32>
    %49 = vector.broadcast %cst_14 : f32 to vector<8x184xf32>
    %50 = arith.select %47, %48, %49 : vector<8x184xi1>, vector<8x184xf32>
    %51 = arith.addf %44, %50 : vector<8x184xf32>
    %52 = vector.extract_strided_slice %0 {offsets = [0, 7], sizes = [8, 1], strides = [1, 1]} : vector<8x24xi32> to vector<8x1xi32>
    %53 = vector.broadcast %52 : vector<8x1xi32> to vector<8x184xi32>
    %54 = arith.cmpi eq, %1, %53 : vector<8x184xi32>
    %cst_15 = arith.constant 4.000000e+00 : f32
    %cst_16 = arith.constant 0.000000e+00 : f32
    %55 = vector.broadcast %cst_15 : f32 to vector<8x184xf32>
    %56 = vector.broadcast %cst_16 : f32 to vector<8x184xf32>
    %57 = arith.select %54, %55, %56 : vector<8x184xi1>, vector<8x184xf32>
    %58 = arith.addf %51, %57 : vector<8x184xf32>
    %59 = vector.extract_strided_slice %0 {offsets = [0, 8], sizes = [8, 1], strides = [1, 1]} : vector<8x24xi32> to vector<8x1xi32>
    %60 = vector.broadcast %59 : vector<8x1xi32> to vector<8x184xi32>
    %61 = arith.cmpi eq, %1, %60 : vector<8x184xi32>
    %cst_17 = arith.constant 4.000000e+00 : f32
    %cst_18 = arith.constant 0.000000e+00 : f32
    %62 = vector.broadcast %cst_17 : f32 to vector<8x184xf32>
    %63 = vector.broadcast %cst_18 : f32 to vector<8x184xf32>
    %64 = arith.select %61, %62, %63 : vector<8x184xi1>, vector<8x184xf32>
    %65 = arith.addf %58, %64 : vector<8x184xf32>
    %66 = vector.extract_strided_slice %0 {offsets = [0, 9], sizes = [8, 1], strides = [1, 1]} : vector<8x24xi32> to vector<8x1xi32>
    %67 = vector.broadcast %66 : vector<8x1xi32> to vector<8x184xi32>
    %68 = arith.cmpi eq, %1, %67 : vector<8x184xi32>
    %cst_19 = arith.constant 4.000000e+00 : f32
    %cst_20 = arith.constant 0.000000e+00 : f32
    %69 = vector.broadcast %cst_19 : f32 to vector<8x184xf32>
    %70 = vector.broadcast %cst_20 : f32 to vector<8x184xf32>
    %71 = arith.select %68, %69, %70 : vector<8x184xi1>, vector<8x184xf32>
    %72 = arith.addf %65, %71 : vector<8x184xf32>
    %73 = vector.extract_strided_slice %0 {offsets = [0, 10], sizes = [8, 1], strides = [1, 1]} : vector<8x24xi32> to vector<8x1xi32>
    %74 = vector.broadcast %73 : vector<8x1xi32> to vector<8x184xi32>
    %75 = arith.cmpi eq, %1, %74 : vector<8x184xi32>
    %cst_21 = arith.constant 4.000000e+00 : f32
    %cst_22 = arith.constant 0.000000e+00 : f32
    %76 = vector.broadcast %cst_21 : f32 to vector<8x184xf32>
    %77 = vector.broadcast %cst_22 : f32 to vector<8x184xf32>
    %78 = arith.select %75, %76, %77 : vector<8x184xi1>, vector<8x184xf32>
    %79 = arith.addf %72, %78 : vector<8x184xf32>
    %80 = vector.extract_strided_slice %0 {offsets = [0, 11], sizes = [8, 1], strides = [1, 1]} : vector<8x24xi32> to vector<8x1xi32>
    %81 = vector.broadcast %80 : vector<8x1xi32> to vector<8x184xi32>
    %82 = arith.cmpi eq, %1, %81 : vector<8x184xi32>
    %cst_23 = arith.constant 4.000000e+00 : f32
    %cst_24 = arith.constant 0.000000e+00 : f32
    %83 = vector.broadcast %cst_23 : f32 to vector<8x184xf32>
    %84 = vector.broadcast %cst_24 : f32 to vector<8x184xf32>
    %85 = arith.select %82, %83, %84 : vector<8x184xi1>, vector<8x184xf32>
    %86 = arith.addf %79, %85 : vector<8x184xf32>
    %87 = vector.extract_strided_slice %0 {offsets = [0, 12], sizes = [8, 1], strides = [1, 1]} : vector<8x24xi32> to vector<8x1xi32>
    %88 = vector.broadcast %87 : vector<8x1xi32> to vector<8x184xi32>
    %89 = arith.cmpi eq, %1, %88 : vector<8x184xi32>
    %cst_25 = arith.constant 4.000000e+00 : f32
    %cst_26 = arith.constant 0.000000e+00 : f32
    %90 = vector.broadcast %cst_25 : f32 to vector<8x184xf32>
    %91 = vector.broadcast %cst_26 : f32 to vector<8x184xf32>
    %92 = arith.select %89, %90, %91 : vector<8x184xi1>, vector<8x184xf32>
    %93 = arith.addf %86, %92 : vector<8x184xf32>
    %94 = vector.extract_strided_slice %0 {offsets = [0, 13], sizes = [8, 1], strides = [1, 1]} : vector<8x24xi32> to vector<8x1xi32>
    %95 = vector.broadcast %94 : vector<8x1xi32> to vector<8x184xi32>
    %96 = arith.cmpi eq, %1, %95 : vector<8x184xi32>
    %cst_27 = arith.constant 4.000000e+00 : f32
    %cst_28 = arith.constant 0.000000e+00 : f32
    %97 = vector.broadcast %cst_27 : f32 to vector<8x184xf32>
    %98 = vector.broadcast %cst_28 : f32 to vector<8x184xf32>
    %99 = arith.select %96, %97, %98 : vector<8x184xi1>, vector<8x184xf32>
    %100 = arith.addf %93, %99 : vector<8x184xf32>
    %101 = vector.extract_strided_slice %0 {offsets = [0, 14], sizes = [8, 1], strides = [1, 1]} : vector<8x24xi32> to vector<8x1xi32>
    %102 = vector.broadcast %101 : vector<8x1xi32> to vector<8x184xi32>
    %103 = arith.cmpi eq, %1, %102 : vector<8x184xi32>
    %cst_29 = arith.constant 4.000000e+00 : f32
    %cst_30 = arith.constant 0.000000e+00 : f32
    %104 = vector.broadcast %cst_29 : f32 to vector<8x184xf32>
    %105 = vector.broadcast %cst_30 : f32 to vector<8x184xf32>
    %106 = arith.select %103, %104, %105 : vector<8x184xi1>, vector<8x184xf32>
    %107 = arith.addf %100, %106 : vector<8x184xf32>
    %108 = vector.extract_strided_slice %0 {offsets = [0, 15], sizes = [8, 1], strides = [1, 1]} : vector<8x24xi32> to vector<8x1xi32>
    %109 = vector.broadcast %108 : vector<8x1xi32> to vector<8x184xi32>
    %110 = arith.cmpi eq, %1, %109 : vector<8x184xi32>
    %cst_31 = arith.constant 4.000000e+00 : f32
    %cst_32 = arith.constant 0.000000e+00 : f32
    %111 = vector.broadcast %cst_31 : f32 to vector<8x184xf32>
    %112 = vector.broadcast %cst_32 : f32 to vector<8x184xf32>
    %113 = arith.select %110, %111, %112 : vector<8x184xi1>, vector<8x184xf32>
    %114 = arith.addf %107, %113 : vector<8x184xf32>
    %115 = vector.extract_strided_slice %0 {offsets = [0, 16], sizes = [8, 1], strides = [1, 1]} : vector<8x24xi32> to vector<8x1xi32>
    %116 = vector.broadcast %115 : vector<8x1xi32> to vector<8x184xi32>
    %117 = arith.cmpi eq, %1, %116 : vector<8x184xi32>
    %cst_33 = arith.constant 4.000000e+00 : f32
    %cst_34 = arith.constant 0.000000e+00 : f32
    %118 = vector.broadcast %cst_33 : f32 to vector<8x184xf32>
    %119 = vector.broadcast %cst_34 : f32 to vector<8x184xf32>
    %120 = arith.select %117, %118, %119 : vector<8x184xi1>, vector<8x184xf32>
    %121 = arith.addf %114, %120 : vector<8x184xf32>
    %122 = vector.extract_strided_slice %0 {offsets = [0, 17], sizes = [8, 1], strides = [1, 1]} : vector<8x24xi32> to vector<8x1xi32>
    %123 = vector.broadcast %122 : vector<8x1xi32> to vector<8x184xi32>
    %124 = arith.cmpi eq, %1, %123 : vector<8x184xi32>
    %cst_35 = arith.constant 4.000000e+00 : f32
    %cst_36 = arith.constant 0.000000e+00 : f32
    %125 = vector.broadcast %cst_35 : f32 to vector<8x184xf32>
    %126 = vector.broadcast %cst_36 : f32 to vector<8x184xf32>
    %127 = arith.select %124, %125, %126 : vector<8x184xi1>, vector<8x184xf32>
    %128 = arith.addf %121, %127 : vector<8x184xf32>
    %129 = vector.extract_strided_slice %0 {offsets = [0, 18], sizes = [8, 1], strides = [1, 1]} : vector<8x24xi32> to vector<8x1xi32>
    %130 = vector.broadcast %129 : vector<8x1xi32> to vector<8x184xi32>
    %131 = arith.cmpi eq, %1, %130 : vector<8x184xi32>
    %cst_37 = arith.constant 4.000000e+00 : f32
    %cst_38 = arith.constant 0.000000e+00 : f32
    %132 = vector.broadcast %cst_37 : f32 to vector<8x184xf32>
    %133 = vector.broadcast %cst_38 : f32 to vector<8x184xf32>
    %134 = arith.select %131, %132, %133 : vector<8x184xi1>, vector<8x184xf32>
    %135 = arith.addf %128, %134 : vector<8x184xf32>
    %136 = vector.extract_strided_slice %0 {offsets = [0, 19], sizes = [8, 1], strides = [1, 1]} : vector<8x24xi32> to vector<8x1xi32>
    %137 = vector.broadcast %136 : vector<8x1xi32> to vector<8x184xi32>
    %138 = arith.cmpi eq, %1, %137 : vector<8x184xi32>
    %cst_39 = arith.constant 4.000000e+00 : f32
    %cst_40 = arith.constant 0.000000e+00 : f32
    %139 = vector.broadcast %cst_39 : f32 to vector<8x184xf32>
    %140 = vector.broadcast %cst_40 : f32 to vector<8x184xf32>
    %141 = arith.select %138, %139, %140 : vector<8x184xi1>, vector<8x184xf32>
    %142 = arith.addf %135, %141 : vector<8x184xf32>
    %143 = vector.extract_strided_slice %0 {offsets = [0, 20], sizes = [8, 1], strides = [1, 1]} : vector<8x24xi32> to vector<8x1xi32>
    %144 = vector.broadcast %143 : vector<8x1xi32> to vector<8x184xi32>
    %145 = arith.cmpi eq, %1, %144 : vector<8x184xi32>
    %cst_41 = arith.constant 4.000000e+00 : f32
    %cst_42 = arith.constant 0.000000e+00 : f32
    %146 = vector.broadcast %cst_41 : f32 to vector<8x184xf32>
    %147 = vector.broadcast %cst_42 : f32 to vector<8x184xf32>
    %148 = arith.select %145, %146, %147 : vector<8x184xi1>, vector<8x184xf32>
    %149 = arith.addf %142, %148 : vector<8x184xf32>
    %150 = vector.extract_strided_slice %0 {offsets = [0, 21], sizes = [8, 1], strides = [1, 1]} : vector<8x24xi32> to vector<8x1xi32>
    %151 = vector.broadcast %150 : vector<8x1xi32> to vector<8x184xi32>
    %152 = arith.cmpi eq, %1, %151 : vector<8x184xi32>
    %cst_43 = arith.constant 4.000000e+00 : f32
    %cst_44 = arith.constant 0.000000e+00 : f32
    %153 = vector.broadcast %cst_43 : f32 to vector<8x184xf32>
    %154 = vector.broadcast %cst_44 : f32 to vector<8x184xf32>
    %155 = arith.select %152, %153, %154 : vector<8x184xi1>, vector<8x184xf32>
    %156 = arith.addf %149, %155 : vector<8x184xf32>
    %157 = vector.extract_strided_slice %0 {offsets = [0, 22], sizes = [8, 1], strides = [1, 1]} : vector<8x24xi32> to vector<8x1xi32>
    %158 = vector.broadcast %157 : vector<8x1xi32> to vector<8x184xi32>
    %159 = arith.cmpi eq, %1, %158 : vector<8x184xi32>
    %cst_45 = arith.constant 4.000000e+00 : f32
    %cst_46 = arith.constant 0.000000e+00 : f32
    %160 = vector.broadcast %cst_45 : f32 to vector<8x184xf32>
    %161 = vector.broadcast %cst_46 : f32 to vector<8x184xf32>
    %162 = arith.select %159, %160, %161 : vector<8x184xi1>, vector<8x184xf32>
    %163 = arith.addf %156, %162 : vector<8x184xf32>
    %164 = vector.extract_strided_slice %0 {offsets = [0, 23], sizes = [8, 1], strides = [1, 1]} : vector<8x24xi32> to vector<8x1xi32>
    %165 = vector.broadcast %164 : vector<8x1xi32> to vector<8x184xi32>
    %166 = arith.cmpi eq, %1, %165 : vector<8x184xi32>
    %cst_47 = arith.constant 4.000000e+00 : f32
    %cst_48 = arith.constant 0.000000e+00 : f32
    %167 = vector.broadcast %cst_47 : f32 to vector<8x184xf32>
    %168 = vector.broadcast %cst_48 : f32 to vector<8x184xf32>
    %169 = arith.select %166, %167, %168 : vector<8x184xi1>, vector<8x184xf32>
    %170 = arith.addf %163, %169 : vector<8x184xf32>
    %c0_49 = arith.constant 0 : index
    %c0_50 = arith.constant 0 : index
    %171 = vector.load %arg2[%c0_49, %c0_50] : memref<184x384xf32, #tpu.memory_space<vmem>>, vector<184x384xf32>
    %cst_51 = arith.constant dense<0.000000e+00> : vector<8x384xf32>
    %172 = tpu.matmul %170, %171, %cst_51 {dimension_numbers = #tpu.dot_dimension_numbers<[1], [0], [0], [1], [0, 0, 1, 1], [], []>, precision = #tpu.contract_precision<fp32>} : vector<8x184xf32>, vector<184x384xf32>, vector<8x384xf32> -> vector<8x384xf32>
    %c0_52 = arith.constant 0 : index
    %c0_53 = arith.constant 0 : index
    %173 = vector.load %arg3[%c0_52, %c0_53] : memref<8x384xf32, #tpu.memory_space<vmem>>, vector<8x384xf32>
    tpu.vector_store %arg3[%c0_52, %c0_53], %172 {strides = array<i32>} : memref<8x384xf32, #tpu.memory_space<vmem>>, vector<8x384xf32>,
    return
  }
  func.func @transform_0(%arg0: i32) -> (i32, i32) {
    %c0_i32 = arith.constant 0 : i32
    %c0_i32_0 = arith.constant 0 : i32
    return %arg0, %c0_i32 : i32, i32
  }
  func.func @transform_1(%arg0: i32) -> (i32, i32) {
    %c0_i32 = arith.constant 0 : i32
    %c0_i32_0 = arith.constant 0 : i32
    %c0_i32_1 = arith.constant 0 : i32
    return %c0_i32, %c0_i32_0 : i32, i32
  }
  func.func @transform_2(%arg0: i32) -> (i32, i32) {
    %c0_i32 = arith.constant 0 : i32
    %c0_i32_0 = arith.constant 0 : i32
    return %arg0, %c0_i32 : i32, i32
  }
}

</mosaic_0001>

<llo_original>
// kernel: tpu_custom_call.1
$region0: #{tpu_custom_call.1}
  #allocation0 [shape = 'u32[]', space=smem, size = 0x4, offset = 0x4, fixed_abs, tag = 'smem constant byte address 0x4 - core index']
  #allocation1 [shape = 'u32[144,128]{1,0:T(1,128)}', space=vmem, size = 0x12000, scoped, tag = 'internal scratch']
  %s0 = inlined_call_operand.hbm [shape: s32[8,24], index: 0, kind: input, shape index: {}]
  %s1 = inlined_call_operand.hbm [shape: f32[184,384], index: 1, kind: input, shape index: {}]
  %s2 = inlined_call_operand.hbm [shape: f32[8,384], index: 2, kind: output, shape index: {}]
  %s3 = sld [smem:[#allocation0]]
  $region26: #{tpu_custom_call.1} parent=0
    _
  %s5 = ssub.s32 1, %s3
  %s6 = scalar_select 0, %s5, %s3
  $region1: #{tpu_custom_call.1} parent=0
    #allocation2 [shape = 'u8[4096]{0}', space=vmem, size = 0x1000, scoped, tag = 'input window, operand 0, single buffered']
    #allocation3 [shape = 's32[1]{0}', space=sflag, size = 0x4, scoped, tag = 'scoped memory for tpu_custom_call.1']
    #allocation4 [shape = 's32[1]{0}', space=sflag, size = 0x4, scoped, tag = 'scoped memory for tpu_custom_call.1']
    #allocation5 [shape = 'u8[282624]{0}', space=vmem, size = 0x45000, scoped, tag = 'input window, operand 1, single buffered']
    #allocation6 [shape = 's32[1]{0}', space=sflag, size = 0x4, scoped, tag = 'scoped memory for tpu_custom_call.1']
    #allocation7 [shape = 'u8[12288]{0}', space=vmem, size = 0x3000, scoped, tag = 'output window, operand 0, single buffered']
    %7 = vsyncpa [#allocation3], 0
    %8 = vsyncpa [#allocation6], 0
    %9 = vsyncpa [#allocation4], 0
    // Predicated region
    $region2: #{tpu_custom_call.1} parent=1 // pred_check
      _
    $region3: #{tpu_custom_call.1} parent=1 // pred_check_branch
      %11 = sbr.rel (0) target = $region5
    $region4: #{tpu_custom_call.1} parent=1 // pred_region
      %s13 = ssub.s32 128, 128
      %14 = vsyncadd [#allocation3], %s13
      %s16 = sshll.u32 [#allocation2], 4
      %s17 = int_to_ptr.vmem [resolvable:$true] %s16
      %19 = dma.hbm_to_vmem [thread:$0]  %s0, 128, %s17, [#allocation3]
    $region5: #{tpu_custom_call.1} parent=1 // pred_fallthru
      _
    // Predicated region
    $region6: #{tpu_custom_call.1} parent=1 // pred_check
      _
    $region7: #{tpu_custom_call.1} parent=1 // pred_check_branch
      %21 = sbr.rel (0) target = $region9
    $region8: #{tpu_custom_call.1} parent=1 // pred_region
      %s23 = ssub.s32 8832, 8832
      %24 = vsyncadd [#allocation6], %s23
      %s25 = sshll.u32 [#allocation5], 4
      %s26 = int_to_ptr.vmem [resolvable:$true] %s25
      %31 = dma.hbm_to_vmem [thread:$0]  %s1, 8832, %s26, [#allocation6], 384, 384, 24
    $region9: #{tpu_custom_call.1} parent=1 // pred_fallthru
      _
    // Predicated region
    $region10: #{tpu_custom_call.1} parent=1 // pred_check
      _
    $region11: #{tpu_custom_call.1} parent=1 // pred_check_branch
      %33 = sbr.rel (0) target = $region13
    $region12: #{tpu_custom_call.1} parent=1 // pred_region
      %34 = dma.done [#allocation3], 128
    $region13: #{tpu_custom_call.1} parent=1 // pred_fallthru
      _
    // Predicated region
    $region14: #{tpu_custom_call.1} parent=1 // pred_check
      _
    $region15: #{tpu_custom_call.1} parent=1 // pred_check_branch
      %36 = sbr.rel (0) target = $region17
    $region16: #{tpu_custom_call.1} parent=1 // pred_region
      %37 = dma.done [#allocation6], 8832
    $region17: #{tpu_custom_call.1} parent=1 // pred_fallthru
      _
    %v38 = vld [vmem:[#allocation2] sm:$0xff]
    %v39 = vlaneseq
    %v40 = vand.u32 %v39, 127
    %v41 = vadd.s32 %v40, 128
    %42 = vset.pattern.permute.xlu0 0
    %43 = vperm.xlu0 %42, %v38
    %v44 = vpop.permute.xlu0 %43
    %vm45 = vcmp.eq.s32.totalorder %v40, %v44
    %vm46 = vcmp.eq.s32.totalorder %v41, %v44
    %v47 = vsel %vm45, 4.0, 0.0
    %v48 = vsel %vm46, 4.0, 0.0
    %v49 = vadd.f32 %v47, 0.0
    %v50 = vadd.f32 %v48, 0.0
    %51 = vset.pattern.permute.xlu0 1
    %52 = vperm.xlu0 %51, %v38
    %v53 = vpop.permute.xlu0 %52
    %vm54 = vcmp.eq.s32.totalorder %v40, %v53
    %vm55 = vcmp.eq.s32.totalorder %v41, %v53
    %v56 = vsel %vm54, 4.0, 0.0
    %v57 = vsel %vm55, 4.0, 0.0
    %v58 = vadd.f32 %v49, %v56
    %v59 = vadd.f32 %v50, %v57
    %60 = vset.pattern.permute.xlu0 2
    %61 = vperm.xlu0 %60, %v38
    %v62 = vpop.permute.xlu0 %61
    %vm63 = vcmp.eq.s32.totalorder %v40, %v62
    %vm64 = vcmp.eq.s32.totalorder %v41, %v62
    %v65 = vsel %vm63, 4.0, 0.0
    %v66 = vsel %vm64, 4.0, 0.0
    %v67 = vadd.f32 %v58, %v65
    %v68 = vadd.f32 %v59, %v66
    %69 = vset.pattern.permute.xlu0 3
    %70 = vperm.xlu0 %69, %v38
    %v71 = vpop.permute.xlu0 %70
    %vm72 = vcmp.eq.s32.totalorder %v40, %v71
    %vm73 = vcmp.eq.s32.totalorder %v41, %v71
    %v74 = vsel %vm72, 4.0, 0.0
    %v75 = vsel %vm73, 4.0, 0.0
    %v76 = vadd.f32 %v67, %v74
    %v77 = vadd.f32 %v68, %v75
    %78 = vset.pattern.permute.xlu0 4
    %79 = vperm.xlu0 %78, %v38
    %v80 = vpop.permute.xlu0 %79
    %vm81 = vcmp.eq.s32.totalorder %v40, %v80
    %vm82 = vcmp.eq.s32.totalorder %v41, %v80
    %v83 = vsel %vm81, 4.0, 0.0
    %v84 = vsel %vm82, 4.0, 0.0
    %v85 = vadd.f32 %v76, %v83
    %v86 = vadd.f32 %v77, %v84
    %87 = vset.pattern.permute.xlu0 5
    %88 = vperm.xlu0 %87, %v38
    %v89 = vpop.permute.xlu0 %88
    %vm90 = vcmp.eq.s32.totalorder %v40, %v89
    %vm91 = vcmp.eq.s32.totalorder %v41, %v89
    %v92 = vsel %vm90, 4.0, 0.0
    %v93 = vsel %vm91, 4.0, 0.0
    %v94 = vadd.f32 %v85, %v92
    %v95 = vadd.f32 %v86, %v93
    %96 = vset.pattern.permute.xlu0 6
    %97 = vperm.xlu0 %96, %v38
    %v98 = vpop.permute.xlu0 %97
    %vm99 = vcmp.eq.s32.totalorder %v40, %v98
    %vm100 = vcmp.eq.s32.totalorder %v41, %v98
    %v101 = vsel %vm99, 4.0, 0.0
    %v102 = vsel %vm100, 4.0, 0.0
    %v103 = vadd.f32 %v94, %v101
    %v104 = vadd.f32 %v95, %v102
    %105 = vset.pattern.permute.xlu0 7
    %106 = vperm.xlu0 %105, %v38
    %v107 = vpop.permute.xlu0 %106
    %vm108 = vcmp.eq.s32.totalorder %v40, %v107
    %vm109 = vcmp.eq.s32.totalorder %v41, %v107
    %v110 = vsel %vm108, 4.0, 0.0
    %v111 = vsel %vm109, 4.0, 0.0
    %v112 = vadd.f32 %v103, %v110
    %v113 = vadd.f32 %v104, %v111
    %114 = vset.pattern.permute.xlu0 8
    %115 = vperm.xlu0 %114, %v38
    %v116 = vpop.permute.xlu0 %115
    %vm117 = vcmp.eq.s32.totalorder %v40, %v116
    %vm118 = vcmp.eq.s32.totalorder %v41, %v116
    %v119 = vsel %vm117, 4.0, 0.0
    %v120 = vsel %vm118, 4.0, 0.0
    %v121 = vadd.f32 %v112, %v119
    %v122 = vadd.f32 %v113, %v120
    %123 = vset.pattern.permute.xlu0 9
    %124 = vperm.xlu0 %123, %v38
    %v125 = vpop.permute.xlu0 %124
    %vm126 = vcmp.eq.s32.totalorder %v40, %v125
    %vm127 = vcmp.eq.s32.totalorder %v41, %v125
    %v128 = vsel %vm126, 4.0, 0.0
    %v129 = vsel %vm127, 4.0, 0.0
    %v130 = vadd.f32 %v121, %v128
    %v131 = vadd.f32 %v122, %v129
    %132 = vset.pattern.permute.xlu0 10
    %133 = vperm.xlu0 %132, %v38
    %v134 = vpop.permute.xlu0 %133
    %vm135 = vcmp.eq.s32.totalorder %v40, %v134
    %vm136 = vcmp.eq.s32.totalorder %v41, %v134
    %v137 = vsel %vm135, 4.0, 0.0
    %v138 = vsel %vm136, 4.0, 0.0
    %v139 = vadd.f32 %v130, %v137
    %v140 = vadd.f32 %v131, %v138
    %141 = vset.pattern.permute.xlu0 11
    %142 = vperm.xlu0 %141, %v38
    %v143 = vpop.permute.xlu0 %142
    %vm144 = vcmp.eq.s32.totalorder %v40, %v143
    %vm145 = vcmp.eq.s32.totalorder %v41, %v143
    %v146 = vsel %vm144, 4.0, 0.0
    %v147 = vsel %vm145, 4.0, 0.0
    %v148 = vadd.f32 %v139, %v146
    %v149 = vadd.f32 %v140, %v147
    %150 = vset.pattern.permute.xlu0 12
    %151 = vperm.xlu0 %150, %v38
    %v152 = vpop.permute.xlu0 %151
    %vm153 = vcmp.eq.s32.totalorder %v40, %v152
    %vm154 = vcmp.eq.s32.totalorder %v41, %v152
    %v155 = vsel %vm153, 4.0, 0.0
    %v156 = vsel %vm154, 4.0, 0.0
    %v157 = vadd.f32 %v148, %v155
    %v158 = vadd.f32 %v149, %v156
    %159 = vset.pattern.permute.xlu0 13
    %160 = vperm.xlu0 %159, %v38
    %v161 = vpop.permute.xlu0 %160
    %vm162 = vcmp.eq.s32.totalorder %v40, %v161
    %vm163 = vcmp.eq.s32.totalorder %v41, %v161
    %v164 = vsel %vm162, 4.0, 0.0
    %v165 = vsel %vm163, 4.0, 0.0
    %v166 = vadd.f32 %v157, %v164
    %v167 = vadd.f32 %v158, %v165
    %168 = vset.pattern.permute.xlu0 14
    %169 = vperm.xlu0 %168, %v38
    %v170 = vpop.permute.xlu0 %169
    %vm171 = vcmp.eq.s32.totalorder %v40, %v170
    %vm172 = vcmp.eq.s32.totalorder %v41, %v170
    %v173 = vsel %vm171, 4.0, 0.0
    %v174 = vsel %vm172, 4.0, 0.0
    %v175 = vadd.f32 %v166, %v173
    %v176 = vadd.f32 %v167, %v174
    %177 = vset.pattern.permute.xlu0 15
    %178 = vperm.xlu0 %177, %v38
    %v179 = vpop.permute.xlu0 %178
    %vm180 = vcmp.eq.s32.totalorder %v40, %v179
    %vm181 = vcmp.eq.s32.totalorder %v41, %v179
    %v182 = vsel %vm180, 4.0, 0.0
    %v183 = vsel %vm181, 4.0, 0.0
    %v184 = vadd.f32 %v175, %v182
    %v185 = vadd.f32 %v176, %v183
    %186 = vset.pattern.permute.xlu0 16
    %187 = vperm.xlu0 %186, %v38
    %v188 = vpop.permute.xlu0 %187
    %vm189 = vcmp.eq.s32.totalorder %v40, %v188
    %vm190 = vcmp.eq.s32.totalorder %v41, %v188
    %v191 = vsel %vm189, 4.0, 0.0
    %v192 = vsel %vm190, 4.0, 0.0
    %v193 = vadd.f32 %v184, %v191
    %v194 = vadd.f32 %v185, %v192
    %195 = vset.pattern.permute.xlu0 17
    %196 = vperm.xlu0 %195, %v38
    %v197 = vpop.permute.xlu0 %196
    %vm198 = vcmp.eq.s32.totalorder %v40, %v197
    %vm199 = vcmp.eq.s32.totalorder %v41, %v197
    %v200 = vsel %vm198, 4.0, 0.0
    %v201 = vsel %vm199, 4.0, 0.0
    %v202 = vadd.f32 %v193, %v200
    %v203 = vadd.f32 %v194, %v201
    %204 = vset.pattern.permute.xlu0 18
    %205 = vperm.xlu0 %204, %v38
    %v206 = vpop.permute.xlu0 %205
    %vm207 = vcmp.eq.s32.totalorder %v40, %v206
    %vm208 = vcmp.eq.s32.totalorder %v41, %v206
    %v209 = vsel %vm207, 4.0, 0.0
    %v210 = vsel %vm208, 4.0, 0.0
    %v211 = vadd.f32 %v202, %v209
    %v212 = vadd.f32 %v203, %v210
    %213 = vset.pattern.permute.xlu0 19
    %214 = vperm.xlu0 %213, %v38
    %v215 = vpop.permute.xlu0 %214
    %vm216 = vcmp.eq.s32.totalorder %v40, %v215
    %vm217 = vcmp.eq.s32.totalorder %v41, %v215
    %v218 = vsel %vm216, 4.0, 0.0
    %v219 = vsel %vm217, 4.0, 0.0
    %v220 = vadd.f32 %v211, %v218
    %v221 = vadd.f32 %v212, %v219
    %222 = vset.pattern.permute.xlu0 20
    %223 = vperm.xlu0 %222, %v38
    %v224 = vpop.permute.xlu0 %223
    %vm225 = vcmp.eq.s32.totalorder %v40, %v224
    %vm226 = vcmp.eq.s32.totalorder %v41, %v224
    %v227 = vsel %vm225, 4.0, 0.0
    %v228 = vsel %vm226, 4.0, 0.0
    %v229 = vadd.f32 %v220, %v227
    %v230 = vadd.f32 %v221, %v228
    %231 = vset.pattern.permute.xlu0 21
    %232 = vperm.xlu0 %231, %v38
    %v233 = vpop.permute.xlu0 %232
    %vm234 = vcmp.eq.s32.totalorder %v40, %v233
    %vm235 = vcmp.eq.s32.totalorder %v41, %v233
    %v236 = vsel %vm234, 4.0, 0.0
    %v237 = vsel %vm235, 4.0, 0.0
    %v238 = vadd.f32 %v229, %v236
    %v239 = vadd.f32 %v230, %v237
    %240 = vset.pattern.permute.xlu0 22
    %241 = vperm.xlu0 %240, %v38
    %v242 = vpop.permute.xlu0 %241
    %vm243 = vcmp.eq.s32.totalorder %v40, %v242
    %vm244 = vcmp.eq.s32.totalorder %v41, %v242
    %v245 = vsel %vm243, 4.0, 0.0
    %v246 = vsel %vm244, 4.0, 0.0
    %v247 = vadd.f32 %v238, %v245
    %v248 = vadd.f32 %v239, %v246
    %249 = vset.pattern.permute.xlu0 23
    %250 = vperm.xlu0 %249, %v38
    %v251 = vpop.permute.xlu0 %250
    %vm252 = vcmp.eq.s32.totalorder %v40, %v251
    %vm253 = vcmp.eq.s32.totalorder %v41, %v251
    %v254 = vsel %vm252, 4.0, 0.0
    %v255 = vsel %vm253, 4.0, 0.0
    %v256 = vadd.f32 %v247, %v254
    %v257 = vadd.f32 %v248, %v255
    %v258 = vld [vmem:[#allocation5] sm:$0xff]
    %v259 = vld [vmem:[#allocation5 + $0x8] sm:$0xff]
    %v260 = vld [vmem:[#allocation5 + $0x10] sm:$0xff]
    %v261 = vld [vmem:[#allocation5 + $0x18] sm:$0xff]
    %v262 = vld [vmem:[#allocation5 + $0x20] sm:$0xff]
    %v263 = vld [vmem:[#allocation5 + $0x28] sm:$0xff]
    %v264 = vld [vmem:[#allocation5 + $0x30] sm:$0xff]
    %v265 = vld [vmem:[#allocation5 + $0x38] sm:$0xff]
    %v266 = vld [vmem:[#allocation5 + $0x40] sm:$0xff]
    %v267 = vld [vmem:[#allocation5 + $0x48] sm:$0xff]
    %v268 = vld [vmem:[#allocation5 + $0x50] sm:$0xff]
    %v269 = vld [vmem:[#allocation5 + $0x58] sm:$0xff]
    %v270 = vld [vmem:[#allocation5 + $0x60] sm:$0xff]
    %v271 = vld [vmem:[#allocation5 + $0x68] sm:$0xff]
    %v272 = vld [vmem:[#allocation5 + $0x70] sm:$0xff]
    %v273 = vld [vmem:[#allocation5 + $0x78] sm:$0xff]
    %v274 = vld [vmem:[#allocation5 + $0x80] sm:$0xff]
    %v275 = vld [vmem:[#allocation5 + $0x88] sm:$0xff]
    %v276 = vld [vmem:[#allocation5 + $0x90] sm:$0xff]
    %v277 = vld [vmem:[#allocation5 + $0x98] sm:$0xff]
    %v278 = vld [vmem:[#allocation5 + $0xa0] sm:$0xff]
    %v279 = vld [vmem:[#allocation5 + $0xa8] sm:$0xff]
    %v280 = vld [vmem:[#allocation5 + $0xb0] sm:$0xff]
    %v281 = vld [vmem:[#allocation5 + $0xb8] sm:$0xff]
    %v282 = vld [vmem:[#allocation5 + $0xc0] sm:$0xff]
    %v283 = vld [vmem:[#allocation5 + $0xc8] sm:$0xff]
    %v284 = vld [vmem:[#allocation5 + $0xd0] sm:$0xff]
    %v285 = vld [vmem:[#allocation5 + $0xd8] sm:$0xff]
    %v286 = vld [vmem:[#allocation5 + $0xe0] sm:$0xff]
    %v287 = vld [vmem:[#allocation5 + $0xe8] sm:$0xff]
    %v288 = vld [vmem:[#allocation5 + $0xf0] sm:$0xff]
    %v289 = vld [vmem:[#allocation5 + $0xf8] sm:$0xff]
    %v290 = vld [vmem:[#allocation5 + $0x100] sm:$0xff]
    %v291 = vld [vmem:[#allocation5 + $0x108] sm:$0xff]
    %v292 = vld [vmem:[#allocation5 + $0x110] sm:$0xff]
    %v293 = vld [vmem:[#allocation5 + $0x118] sm:$0xff]
    %v294 = vld [vmem:[#allocation5 + $0x120] sm:$0xff]
    %v295 = vld [vmem:[#allocation5 + $0x128] sm:$0xff]
    %v296 = vld [vmem:[#allocation5 + $0x130] sm:$0xff]
    %v297 = vld [vmem:[#allocation5 + $0x138] sm:$0xff]
    %v298 = vld [vmem:[#allocation5 + $0x140] sm:$0xff]
    %v299 = vld [vmem:[#allocation5 + $0x148] sm:$0xff]
    %v300 = vld [vmem:[#allocation5 + $0x150] sm:$0xff]
    %v301 = vld [vmem:[#allocation5 + $0x158] sm:$0xff]
    %v302 = vld [vmem:[#allocation5 + $0x160] sm:$0xff]
    %v303 = vld [vmem:[#allocation5 + $0x168] sm:$0xff]
    %v304 = vld [vmem:[#allocation5 + $0x170] sm:$0xff]
    %v305 = vld [vmem:[#allocation5 + $0x178] sm:$0xff]
    %v306 = vld [vmem:[#allocation5 + $0x180] sm:$0xff]
    %v307 = vld [vmem:[#allocation5 + $0x188] sm:$0xff]
    %v308 = vld [vmem:[#allocation5 + $0x190] sm:$0xff]
    %v309 = vld [vmem:[#allocation5 + $0x198] sm:$0xff]
    %v310 = vld [vmem:[#allocation5 + $0x1a0] sm:$0xff]
    %v311 = vld [vmem:[#allocation5 + $0x1a8] sm:$0xff]
    %v312 = vld [vmem:[#allocation5 + $0x1b0] sm:$0xff]
    %v313 = vld [vmem:[#allocation5 + $0x1b8] sm:$0xff]
    %v314 = vld [vmem:[#allocation5 + $0x1c0] sm:$0xff]
    %v315 = vld [vmem:[#allocation5 + $0x1c8] sm:$0xff]
    %v316 = vld [vmem:[#allocation5 + $0x1d0] sm:$0xff]
    %v317 = vld [vmem:[#allocation5 + $0x1d8] sm:$0xff]
    %v318 = vld [vmem:[#allocation5 + $0x1e0] sm:$0xff]
    %v319 = vld [vmem:[#allocation5 + $0x1e8] sm:$0xff]
    %v320 = vld [vmem:[#allocation5 + $0x1f0] sm:$0xff]
    %v321 = vld [vmem:[#allocation5 + $0x1f8] sm:$0xff]
    %v322 = vld [vmem:[#allocation5 + $0x200] sm:$0xff]
    %v323 = vld [vmem:[#allocation5 + $0x208] sm:$0xff]
    %v324 = vld [vmem:[#allocation5 + $0x210] sm:$0xff]
    %v325 = vld [vmem:[#allocation5 + $0x218] sm:$0xff]
    %v326 = vld [vmem:[#allocation5 + $0x220] sm:$0xff]
    %vm327 = vcmask 457728
    %v329 = vsel %vm327, %v257, 0
    %v331 = vand.u32 %v259, 4294901760
    %332 = vmatprep.subr.mxu0 %v331
    %v333 = vand.u32 %v258, 4294901760
    %334 = vmatpush1.msra.mxu0 %v333
    %v335 = vand.u32 %v262, 4294901760
    %336 = vmatprep.subr.mxu0 %v335
    %v337 = vand.u32 %v261, 4294901760
    %338 = vmatpush1.msra.mxu0 %v337
    %v339 = vand.u32 %v265, 4294901760
    %340 = vmatprep.subr.mxu0 %v339
    %v341 = vand.u32 %v264, 4294901760
    %342 = vmatpush1.msra.mxu0 %v341
    %v343 = vand.u32 %v268, 4294901760
    %344 = vmatprep.subr.mxu0 %v343
    %v345 = vand.u32 %v267, 4294901760
    %346 = vmatpush1.msra.mxu0 %v345
    %v347 = vand.u32 %v271, 4294901760
    %348 = vmatprep.subr.mxu0 %v347
    %v349 = vand.u32 %v270, 4294901760
    %350 = vmatpush1.msra.mxu0 %v349
    %v351 = vand.u32 %v274, 4294901760
    %352 = vmatprep.subr.mxu0 %v351
    %v353 = vand.u32 %v273, 4294901760
    %354 = vmatpush1.msra.mxu0 %v353
    %v355 = vand.u32 %v277, 4294901760
    %356 = vmatprep.subr.mxu0 %v355
    %v357 = vand.u32 %v276, 4294901760
    %358 = vmatpush1.msra.mxu0 %v357
    %v359 = vand.u32 %v280, 4294901760
    %360 = vmatprep.subr.mxu0 %v359
    %v361 = vand.u32 %v279, 4294901760
    %362 = vmatpush1.msra.mxu0 %v361
    %v363 = vand.u32 %v283, 4294901760
    %364 = vmatprep.subr.mxu0 %v363
    %v365 = vand.u32 %v282, 4294901760
    %366 = vmatpush1.msra.mxu0 %v365
    %v367 = vand.u32 %v286, 4294901760
    %368 = vmatprep.subr.mxu0 %v367
    %v369 = vand.u32 %v285, 4294901760
    %370 = vmatpush1.msra.mxu0 %v369
    %v371 = vand.u32 %v289, 4294901760
    %372 = vmatprep.subr.mxu0 %v371
    %v373 = vand.u32 %v288, 4294901760
    %374 = vmatpush1.msra.mxu0 %v373
    %v375 = vand.u32 %v292, 4294901760
    %376 = vmatprep.subr.mxu0 %v375
    %v377 = vand.u32 %v291, 4294901760
    %378 = vmatpush1.msra.mxu0 %v377
    %v379 = vand.u32 %v295, 4294901760
    %380 = vmatprep.subr.mxu0 %v379
    %v381 = vand.u32 %v294, 4294901760
    %382 = vmatpush1.msra.mxu0 %v381
    %v383 = vand.u32 %v298, 4294901760
    %384 = vmatprep.subr.mxu0 %v383
    %v385 = vand.u32 %v297, 4294901760
    %386 = vmatpush1.msra.mxu0 %v385
    %v387 = vand.u32 %v301, 4294901760
    %388 = vmatprep.subr.mxu0 %v387
    %v389 = vand.u32 %v300, 4294901760
    %390 = vmatpush1.msra.mxu0 %v389
    %v391 = vand.u32 %v304, 4294901760
    %392 = vmatprep.subr.mxu0 %v391
    %v393 = vand.u32 %v303, 4294901760
    %394 = vmatpush1.msra.mxu0 %v393
    %v395 = vand.u32 %v307, 4294901760
    %396 = vmatprep.subr.mxu0 %v395
    %v397 = vand.u32 %v306, 4294901760
    %398 = vmatpush1.msra.mxu0 %v397
    %v399 = vand.u32 %v310, 4294901760
    %400 = vmatprep.subr.mxu0 %v399
    %v401 = vand.u32 %v309, 4294901760
    %402 = vmatpush1.msra.mxu0 %v401
    %v403 = vand.u32 %v313, 4294901760
    %404 = vmatprep.subr.mxu0 %v403
    %v405 = vand.u32 %v312, 4294901760
    %406 = vmatpush1.msra.mxu0 %v405
    %v407 = vand.u32 %v316, 4294901760
    %408 = vmatprep.subr.mxu0 %v407
    %v409 = vand.u32 %v315, 4294901760
    %410 = vmatpush1.msra.mxu0 %v409
    %v411 = vand.u32 %v319, 4294901760
    %412 = vmatprep.subr.mxu0 %v411
    %v413 = vand.u32 %v318, 4294901760
    %414 = vmatpush1.msra.mxu0 %v413
    %v415 = vand.u32 %v322, 4294901760
    %416 = vmatprep.subr.mxu0 %v415
    %v417 = vand.u32 %v321, 4294901760
    %418 = vmatpush1.msra.mxu0 %v417
    %v419 = vand.u32 %v325, 4294901760
    %420 = vmatprep.subr.mxu0 %v419
    %v421 = vand.u32 %v324, 4294901760
    %422 = vmatpush1.msra.mxu0 %v421
    %423 = vmatprep.subr.mxu0 0.0
    %424 = vmatpush1.msra.mxu0 0.0
    %425 = vmatprep.subr.mxu0 0.0
    %426 = vmatpush1.msra.mxu0 0.0
    %427 = vmatprep.subr.mxu0 0.0
    %428 = vmatpush1.msra.mxu0 0.0
    %429 = vmatprep.subr.mxu0 0.0
    %430 = vmatpush1.msra.mxu0 0.0
    %431 = vmatprep.subr.mxu0 0.0
    %432 = vmatpush1.msra.mxu0 0.0
    %433 = vmatprep.subr.mxu0 0.0
    %434 = vmatpush1.msra.mxu0 0.0
    %435 = vmatprep.subr.mxu0 0.0
    %436 = vmatpush1.msra.mxu0 0.0
    %437 = vmatprep.subr.mxu0 0.0
    %438 = vmatpush1.msra.mxu0 0.0
    %439 = vmatprep.subr.mxu0 0.0
    %440 = vmatpush1.msra.mxu0 0.0
    %v441 = vand.u32 %v329, 4294901760
    %v442 = vsub.f32 %v329, %v441
    %v443 = vand.u32 %v442, 4294901760
    %v444 = vsub.f32 %v442, %v443
    %v445 = vand.u32 %v444, 4294901760
    %446 = vmatprep.mubr.f32.mxu0 %v445
    %v447 = vand.u32 %v256, 4294901760
    %v448 = vsub.f32 %v256, %v447
    %v449 = vand.u32 %v448, 4294901760
    %v450 = vsub.f32 %v448, %v449
    %v451 = vand.u32 %v450, 4294901760
    %452 = vmatmul.mubr.f32.gmra.mrb[0].mxu0 %v451
    %v453 = vpop.f32.mrb[0].mxu0
    %v454 = vadd.f32 0.0, %v453
    %v455 = vpop.f32.mrb[0].mxu0
    %v456 = vadd.f32 0.0, %v455
    %457 = vdwg.mxu0
    %v458 = vand.u32 %v259, 4294901760
    %v459 = vsub.f32 %v259, %v458
    %v460 = vand.u32 %v459, 4294901760
    %v461 = vsub.f32 %v459, %v460
    %v462 = vand.u32 %v461, 4294901760
    %463 = vmatprep.subr.mxu0 %v462
    %v464 = vand.u32 %v258, 4294901760
    %v465 = vsub.f32 %v258, %v464
    %v466 = vand.u32 %v465, 4294901760
    %v467 = vsub.f32 %v465, %v466
    %v468 = vand.u32 %v467, 4294901760
    %469 = vmatpush1.msra.mxu0 %v468
    %v470 = vand.u32 %v262, 4294901760
    %v471 = vsub.f32 %v262, %v470
    %v472 = vand.u32 %v471, 4294901760
    %v473 = vsub.f32 %v471, %v472
    %v474 = vand.u32 %v473, 4294901760
    %475 = vmatprep.subr.mxu0 %v474
    %v476 = vand.u32 %v261, 4294901760
    %v477 = vsub.f32 %v261, %v476
    %v478 = vand.u32 %v477, 4294901760
    %v479 = vsub.f32 %v477, %v478
    %v480 = vand.u32 %v479, 4294901760
    %481 = vmatpush1.msra.mxu0 %v480
    %v482 = vand.u32 %v265, 4294901760
    %v483 = vsub.f32 %v265, %v482
    %v484 = vand.u32 %v483, 4294901760
    %v485 = vsub.f32 %v483, %v484
    %v486 = vand.u32 %v485, 4294901760
    %487 = vmatprep.subr.mxu0 %v486
    %v488 = vand.u32 %v264, 4294901760
    %v489 = vsub.f32 %v264, %v488
    %v490 = vand.u32 %v489, 4294901760
    %v491 = vsub.f32 %v489, %v490
    %v492 = vand.u32 %v491, 4294901760
    %493 = vmatpush1.msra.mxu0 %v492
    %v494 = vand.u32 %v268, 4294901760
    %v495 = vsub.f32 %v268, %v494
    %v496 = vand.u32 %v495, 4294901760
    %v497 = vsub.f32 %v495, %v496
    %v498 = vand.u32 %v497, 4294901760
    %499 = vmatprep.subr.mxu0 %v498
    %v500 = vand.u32 %v267, 4294901760
    %v501 = vsub.f32 %v267, %v500
    %v502 = vand.u32 %v501, 4294901760
    %v503 = vsub.f32 %v501, %v502
    %v504 = vand.u32 %v503, 4294901760
    %505 = vmatpush1.msra.mxu0 %v504
    %v506 = vand.u32 %v271, 4294901760
    %v507 = vsub.f32 %v271, %v506
    %v508 = vand.u32 %v507, 4294901760
    %v509 = vsub.f32 %v507, %v508
    %v510 = vand.u32 %v509, 4294901760
    %511 = vmatprep.subr.mxu0 %v510
    %v512 = vand.u32 %v270, 4294901760
    %v513 = vsub.f32 %v270, %v512
    %v514 = vand.u32 %v513, 4294901760
    %v515 = vsub.f32 %v513, %v514
    %v516 = vand.u32 %v515, 4294901760
    %517 = vmatpush1.msra.mxu0 %v516
    %v518 = vand.u32 %v274, 4294901760
    %v519 = vsub.f32 %v274, %v518
    %v520 = vand.u32 %v519, 4294901760
    %v521 = vsub.f32 %v519, %v520
    %v522 = vand.u32 %v521, 4294901760
    %523 = vmatprep.subr.mxu0 %v522
    %v524 = vand.u32 %v273, 4294901760
    %v525 = vsub.f32 %v273, %v524
    %v526 = vand.u32 %v525, 4294901760
    %v527 = vsub.f32 %v525, %v526
    %v528 = vand.u32 %v527, 4294901760
    %529 = vmatpush1.msra.mxu0 %v528
    %v530 = vand.u32 %v277, 4294901760
    %v531 = vsub.f32 %v277, %v530
    %v532 = vand.u32 %v531, 4294901760
    %v533 = vsub.f32 %v531, %v532
    %v534 = vand.u32 %v533, 4294901760
    %535 = vmatprep.subr.mxu0 %v534
    %v536 = vand.u32 %v276, 4294901760
    %v537 = vsub.f32 %v276, %v536
    %v538 = vand.u32 %v537, 4294901760
    %v539 = vsub.f32 %v537, %v538
    %v540 = vand.u32 %v539, 4294901760
    %541 = vmatpush1.msra.mxu0 %v540
    %v542 = vand.u32 %v280, 4294901760
    %v543 = vsub.f32 %v280, %v542
    %v544 = vand.u32 %v543, 4294901760
    %v545 = vsub.f32 %v543, %v544
    %v546 = vand.u32 %v545, 4294901760
    %547 = vmatprep.subr.mxu0 %v546
    %v548 = vand.u32 %v279, 4294901760
    %v549 = vsub.f32 %v279, %v548
    %v550 = vand.u32 %v549, 4294901760
    %v551 = vsub.f32 %v549, %v550
    %v552 = vand.u32 %v551, 4294901760
    %553 = vmatpush1.msra.mxu0 %v552
    %v554 = vand.u32 %v283, 4294901760
    %v555 = vsub.f32 %v283, %v554
    %v556 = vand.u32 %v555, 4294901760
    %v557 = vsub.f32 %v555, %v556
    %v558 = vand.u32 %v557, 4294901760
    %559 = vmatprep.subr.mxu0 %v558
    %v560 = vand.u32 %v282, 4294901760
    %v561 = vsub.f32 %v282, %v560
    %v562 = vand.u32 %v561, 4294901760
    %v563 = vsub.f32 %v561, %v562
    %v564 = vand.u32 %v563, 4294901760
    %565 = vmatpush1.msra.mxu0 %v564
    %v566 = vand.u32 %v286, 4294901760
    %v567 = vsub.f32 %v286, %v566
    %v568 = vand.u32 %v567, 4294901760
    %v569 = vsub.f32 %v567, %v568
    %v570 = vand.u32 %v569, 4294901760
    %571 = vmatprep.subr.mxu0 %v570
    %v572 = vand.u32 %v285, 4294901760
    %v573 = vsub.f32 %v285, %v572
    %v574 = vand.u32 %v573, 4294901760
    %v575 = vsub.f32 %v573, %v574
    %v576 = vand.u32 %v575, 4294901760
    %577 = vmatpush1.msra.mxu0 %v576
    %v578 = vand.u32 %v289, 4294901760
    %v579 = vsub.f32 %v289, %v578
    %v580 = vand.u32 %v579, 4294901760
    %v581 = vsub.f32 %v579, %v580
    %v582 = vand.u32 %v581, 4294901760
    %583 = vmatprep.subr.mxu0 %v582
    %v584 = vand.u32 %v288, 4294901760
    %v585 = vsub.f32 %v288, %v584
    %v586 = vand.u32 %v585, 4294901760
    %v587 = vsub.f32 %v585, %v586
    %v588 = vand.u32 %v587, 4294901760
    %589 = vmatpush1.msra.mxu0 %v588
    %v590 = vand.u32 %v292, 4294901760
    %v591 = vsub.f32 %v292, %v590
    %v592 = vand.u32 %v591, 4294901760
    %v593 = vsub.f32 %v591, %v592
    %v594 = vand.u32 %v593, 4294901760
    %595 = vmatprep.subr.mxu0 %v594
    %v596 = vand.u32 %v291, 4294901760
    %v597 = vsub.f32 %v291, %v596
    %v598 = vand.u32 %v597, 4294901760
    %v599 = vsub.f32 %v597, %v598
    %v600 = vand.u32 %v599, 4294901760
    %601 = vmatpush1.msra.mxu0 %v600
    %v602 = vand.u32 %v295, 4294901760
    %v603 = vsub.f32 %v295, %v602
    %v604 = vand.u32 %v603, 4294901760
    %v605 = vsub.f32 %v603, %v604
    %v606 = vand.u32 %v605, 4294901760
    %607 = vmatprep.subr.mxu0 %v606
    %v608 = vand.u32 %v294, 4294901760
    %v609 = vsub.f32 %v294, %v608
    %v610 = vand.u32 %v609, 4294901760
    %v611 = vsub.f32 %v609, %v610
    %v612 = vand.u32 %v611, 4294901760
    %613 = vmatpush1.msra.mxu0 %v612
    %v614 = vand.u32 %v298, 4294901760
    %v615 = vsub.f32 %v298, %v614
    %v616 = vand.u32 %v615, 4294901760
    %v617 = vsub.f32 %v615, %v616
    %v618 = vand.u32 %v617, 4294901760
    %619 = vmatprep.subr.mxu0 %v618
    %v620 = vand.u32 %v297, 4294901760
    %v621 = vsub.f32 %v297, %v620
    %v622 = vand.u32 %v621, 4294901760
    %v623 = vsub.f32 %v621, %v622
    %v624 = vand.u32 %v623, 4294901760
    %625 = vmatpush1.msra.mxu0 %v624
    %v626 = vand.u32 %v301, 4294901760
    %v627 = vsub.f32 %v301, %v626
    %v628 = vand.u32 %v627, 4294901760
    %v629 = vsub.f32 %v627, %v628
    %v630 = vand.u32 %v629, 4294901760
    %631 = vmatprep.subr.mxu0 %v630
    %v632 = vand.u32 %v300, 4294901760
    %v633 = vsub.f32 %v300, %v632
    %v634 = vand.u32 %v633, 4294901760
    %v635 = vsub.f32 %v633, %v634
    %v636 = vand.u32 %v635, 4294901760
    %637 = vmatpush1.msra.mxu0 %v636
    %v638 = vand.u32 %v304, 4294901760
    %v639 = vsub.f32 %v304, %v638
    %v640 = vand.u32 %v639, 4294901760
    %v641 = vsub.f32 %v639, %v640
    %v642 = vand.u32 %v641, 4294901760
    %643 = vmatprep.subr.mxu0 %v642
    %v644 = vand.u32 %v303, 4294901760
    %v645 = vsub.f32 %v303, %v644
    %v646 = vand.u32 %v645, 4294901760
    %v647 = vsub.f32 %v645, %v646
    %v648 = vand.u32 %v647, 4294901760
    %649 = vmatpush1.msra.mxu0 %v648
    %v650 = vand.u32 %v307, 4294901760
    %v651 = vsub.f32 %v307, %v650
    %v652 = vand.u32 %v651, 4294901760
    %v653 = vsub.f32 %v651, %v652
    %v654 = vand.u32 %v653, 4294901760
    %655 = vmatprep.subr.mxu0 %v654
    %v656 = vand.u32 %v306, 4294901760
    %v657 = vsub.f32 %v306, %v656
    %v658 = vand.u32 %v657, 4294901760
    %v659 = vsub.f32 %v657, %v658
    %v660 = vand.u32 %v659, 4294901760
    %661 = vmatpush1.msra.mxu0 %v660
    %v662 = vand.u32 %v310, 4294901760
    %v663 = vsub.f32 %v310, %v662
    %v664 = vand.u32 %v663, 4294901760
    %v665 = vsub.f32 %v663, %v664
    %v666 = vand.u32 %v665, 4294901760
    %667 = vmatprep.subr.mxu0 %v666
    %v668 = vand.u32 %v309, 4294901760
    %v669 = vsub.f32 %v309, %v668
    %v670 = vand.u32 %v669, 4294901760
    %v671 = vsub.f32 %v669, %v670
    %v672 = vand.u32 %v671, 4294901760
    %673 = vmatpush1.msra.mxu0 %v672
    %v674 = vand.u32 %v313, 4294901760
    %v675 = vsub.f32 %v313, %v674
    %v676 = vand.u32 %v675, 4294901760
    %v677 = vsub.f32 %v675, %v676
    %v678 = vand.u32 %v677, 4294901760
    %679 = vmatprep.subr.mxu0 %v678
    %v680 = vand.u32 %v312, 4294901760
    %v681 = vsub.f32 %v312, %v680
    %v682 = vand.u32 %v681, 4294901760
    %v683 = vsub.f32 %v681, %v682
    %v684 = vand.u32 %v683, 4294901760
    %685 = vmatpush1.msra.mxu0 %v684
    %v686 = vand.u32 %v316, 4294901760
    %v687 = vsub.f32 %v316, %v686
    %v688 = vand.u32 %v687, 4294901760
    %v689 = vsub.f32 %v687, %v688
    %v690 = vand.u32 %v689, 4294901760
    %691 = vmatprep.subr.mxu0 %v690
    %v692 = vand.u32 %v315, 4294901760
    %v693 = vsub.f32 %v315, %v692
    %v694 = vand.u32 %v693, 4294901760
    %v695 = vsub.f32 %v693, %v694
    %v696 = vand.u32 %v695, 4294901760
    %697 = vmatpush1.msra.mxu0 %v696
    %v698 = vand.u32 %v319, 4294901760
    %v699 = vsub.f32 %v319, %v698
    %v700 = vand.u32 %v699, 4294901760
    %v701 = vsub.f32 %v699, %v700
    %v702 = vand.u32 %v701, 4294901760
    %703 = vmatprep.subr.mxu0 %v702
    %v704 = vand.u32 %v318, 4294901760
    %v705 = vsub.f32 %v318, %v704
    %v706 = vand.u32 %v705, 4294901760
    %v707 = vsub.f32 %v705, %v706
    %v708 = vand.u32 %v707, 4294901760
    %709 = vmatpush1.msra.mxu0 %v708
    %v710 = vand.u32 %v322, 4294901760
    %v711 = vsub.f32 %v322, %v710
    %v712 = vand.u32 %v711, 4294901760
    %v713 = vsub.f32 %v711, %v712
    %v714 = vand.u32 %v713, 4294901760
    %715 = vmatprep.subr.mxu0 %v714
    %v716 = vand.u32 %v321, 4294901760
    %v717 = vsub.f32 %v321, %v716
    %v718 = vand.u32 %v717, 4294901760
    %v719 = vsub.f32 %v717, %v718
    %v720 = vand.u32 %v719, 4294901760
    %721 = vmatpush1.msra.mxu0 %v720
    %v722 = vand.u32 %v325, 4294901760
    %v723 = vsub.f32 %v325, %v722
    %v724 = vand.u32 %v723, 4294901760
    %v725 = vsub.f32 %v723, %v724
    %v726 = vand.u32 %v725, 4294901760
    %727 = vmatprep.subr.mxu0 %v726
    %v728 = vand.u32 %v324, 4294901760
    %v729 = vsub.f32 %v324, %v728
    %v730 = vand.u32 %v729, 4294901760
    %v731 = vsub.f32 %v729, %v730
    %v732 = vand.u32 %v731, 4294901760
    %733 = vmatpush1.msra.mxu0 %v732
    %734 = vmatprep.subr.mxu0 0.0
    %735 = vmatpush1.msra.mxu0 0.0
    %736 = vmatprep.subr.mxu0 0.0
    %737 = vmatpush1.msra.mxu0 0.0
    %738 = vmatprep.subr.mxu0 0.0
    %739 = vmatpush1.msra.mxu0 0.0
    %740 = vmatprep.subr.mxu0 0.0
    %741 = vmatpush1.msra.mxu0 0.0
    %742 = vmatprep.subr.mxu0 0.0
    %743 = vmatpush1.msra.mxu0 0.0
    %744 = vmatprep.subr.mxu0 0.0
    %745 = vmatpush1.msra.mxu0 0.0
    %746 = vmatprep.subr.mxu0 0.0
    %747 = vmatpush1.msra.mxu0 0.0
    %748 = vmatprep.subr.mxu0 0.0
    %749 = vmatpush1.msra.mxu0 0.0
    %750 = vmatprep.subr.mxu0 0.0
    %751 = vmatpush1.msra.mxu0 0.0
    %v752 = vand.u32 %v329, 4294901760
    %753 = vmatprep.mubr.f32.mxu0 %v752
    %v754 = vand.u32 %v256, 4294901760
    %755 = vmatmul.mubr.f32.gmra.mrb[0].mxu0 %v754
    %v756 = vpop.f32.mrb[0].mxu0
    %v757 = vadd.f32 %v454, %v756
    %v758 = vpop.f32.mrb[0].mxu0
    %v759 = vadd.f32 %v456, %v758
    %760 = vdwg.mxu0
    %v761 = vand.u32 %v259, 4294901760
    %v762 = vsub.f32 %v259, %v761
    %763 = vmatprep.subr.mxu0 %v762
    %v764 = vand.u32 %v258, 4294901760
    %v765 = vsub.f32 %v258, %v764
    %766 = vmatpush1.msra.mxu0 %v765
    %v767 = vand.u32 %v262, 4294901760
    %v768 = vsub.f32 %v262, %v767
    %769 = vmatprep.subr.mxu0 %v768
    %v770 = vand.u32 %v261, 4294901760
    %v771 = vsub.f32 %v261, %v770
    %772 = vmatpush1.msra.mxu0 %v771
    %v773 = vand.u32 %v265, 4294901760
    %v774 = vsub.f32 %v265, %v773
    %775 = vmatprep.subr.mxu0 %v774
    %v776 = vand.u32 %v264, 4294901760
    %v777 = vsub.f32 %v264, %v776
    %778 = vmatpush1.msra.mxu0 %v777
    %v779 = vand.u32 %v268, 4294901760
    %v780 = vsub.f32 %v268, %v779
    %781 = vmatprep.subr.mxu0 %v780
    %v782 = vand.u32 %v267, 4294901760
    %v783 = vsub.f32 %v267, %v782
    %784 = vmatpush1.msra.mxu0 %v783
    %v785 = vand.u32 %v271, 4294901760
    %v786 = vsub.f32 %v271, %v785
    %787 = vmatprep.subr.mxu0 %v786
    %v788 = vand.u32 %v270, 4294901760
    %v789 = vsub.f32 %v270, %v788
    %790 = vmatpush1.msra.mxu0 %v789
    %v791 = vand.u32 %v274, 4294901760
    %v792 = vsub.f32 %v274, %v791
    %793 = vmatprep.subr.mxu0 %v792
    %v794 = vand.u32 %v273, 4294901760
    %v795 = vsub.f32 %v273, %v794
    %796 = vmatpush1.msra.mxu0 %v795
    %v797 = vand.u32 %v277, 4294901760
    %v798 = vsub.f32 %v277, %v797
    %799 = vmatprep.subr.mxu0 %v798
    %v800 = vand.u32 %v276, 4294901760
    %v801 = vsub.f32 %v276, %v800
    %802 = vmatpush1.msra.mxu0 %v801
    %v803 = vand.u32 %v280, 4294901760
    %v804 = vsub.f32 %v280, %v803
    %805 = vmatprep.subr.mxu0 %v804
    %v806 = vand.u32 %v279, 4294901760
    %v807 = vsub.f32 %v279, %v806
    %808 = vmatpush1.msra.mxu0 %v807
    %v809 = vand.u32 %v283, 4294901760
    %v810 = vsub.f32 %v283, %v809
    %811 = vmatprep.subr.mxu0 %v810
    %v812 = vand.u32 %v282, 4294901760
    %v813 = vsub.f32 %v282, %v812
    %814 = vmatpush1.msra.mxu0 %v813
    %v815 = vand.u32 %v286, 4294901760
    %v816 = vsub.f32 %v286, %v815
    %817 = vmatprep.subr.mxu0 %v816
    %v818 = vand.u32 %v285, 4294901760
    %v819 = vsub.f32 %v285, %v818
    %820 = vmatpush1.msra.mxu0 %v819
    %v821 = vand.u32 %v289, 4294901760
    %v822 = vsub.f32 %v289, %v821
    %823 = vmatprep.subr.mxu0 %v822
    %v824 = vand.u32 %v288, 4294901760
    %v825 = vsub.f32 %v288, %v824
    %826 = vmatpush1.msra.mxu0 %v825
    %v827 = vand.u32 %v292, 4294901760
    %v828 = vsub.f32 %v292, %v827
    %829 = vmatprep.subr.mxu0 %v828
    %v830 = vand.u32 %v291, 4294901760
    %v831 = vsub.f32 %v291, %v830
    %832 = vmatpush1.msra.mxu0 %v831
    %v833 = vand.u32 %v295, 4294901760
    %v834 = vsub.f32 %v295, %v833
    %835 = vmatprep.subr.mxu0 %v834
    %v836 = vand.u32 %v294, 4294901760
    %v837 = vsub.f32 %v294, %v836
    %838 = vmatpush1.msra.mxu0 %v837
    %v839 = vand.u32 %v298, 4294901760
    %v840 = vsub.f32 %v298, %v839
    %841 = vmatprep.subr.mxu0 %v840
    %v842 = vand.u32 %v297, 4294901760
    %v843 = vsub.f32 %v297, %v842
    %844 = vmatpush1.msra.mxu0 %v843
    %v845 = vand.u32 %v301, 4294901760
    %v846 = vsub.f32 %v301, %v845
    %847 = vmatprep.subr.mxu0 %v846
    %v848 = vand.u32 %v300, 4294901760
    %v849 = vsub.f32 %v300, %v848
    %850 = vmatpush1.msra.mxu0 %v849
    %v851 = vand.u32 %v304, 4294901760
    %v852 = vsub.f32 %v304, %v851
    %853 = vmatprep.subr.mxu0 %v852
    %v854 = vand.u32 %v303, 4294901760
    %v855 = vsub.f32 %v303, %v854
    %856 = vmatpush1.msra.mxu0 %v855
    %v857 = vand.u32 %v307, 4294901760
    %v858 = vsub.f32 %v307, %v857
    %859 = vmatprep.subr.mxu0 %v858
    %v860 = vand.u32 %v306, 4294901760
    %v861 = vsub.f32 %v306, %v860
    %862 = vmatpush1.msra.mxu0 %v861
    %v863 = vand.u32 %v310, 4294901760
    %v864 = vsub.f32 %v310, %v863
    %865 = vmatprep.subr.mxu0 %v864
    %v866 = vand.u32 %v309, 4294901760
    %v867 = vsub.f32 %v309, %v866
    %868 = vmatpush1.msra.mxu0 %v867
    %v869 = vand.u32 %v313, 4294901760
    %v870 = vsub.f32 %v313, %v869
    %871 = vmatprep.subr.mxu0 %v870
    %v872 = vand.u32 %v312, 4294901760
    %v873 = vsub.f32 %v312, %v872
    %874 = vmatpush1.msra.mxu0 %v873
    %v875 = vand.u32 %v316, 4294901760
    %v876 = vsub.f32 %v316, %v875
    %877 = vmatprep.subr.mxu0 %v876
    %v878 = vand.u32 %v315, 4294901760
    %v879 = vsub.f32 %v315, %v878
    %880 = vmatpush1.msra.mxu0 %v879
    %v881 = vand.u32 %v319, 4294901760
    %v882 = vsub.f32 %v319, %v881
    %883 = vmatprep.subr.mxu0 %v882
    %v884 = vand.u32 %v318, 4294901760
    %v885 = vsub.f32 %v318, %v884
    %886 = vmatpush1.msra.mxu0 %v885
    %v887 = vand.u32 %v322, 4294901760
    %v888 = vsub.f32 %v322, %v887
    %889 = vmatprep.subr.mxu0 %v888
    %v890 = vand.u32 %v321, 4294901760
    %v891 = vsub.f32 %v321, %v890
    %892 = vmatpush1.msra.mxu0 %v891
    %v893 = vand.u32 %v325, 4294901760
    %v894 = vsub.f32 %v325, %v893
    %895 = vmatprep.subr.mxu0 %v894
    %v896 = vand.u32 %v324, 4294901760
    %v897 = vsub.f32 %v324, %v896
    %898 = vmatpush1.msra.mxu0 %v897
    %899 = vmatprep.subr.mxu0 0.0
    %900 = vmatpush1.msra.mxu0 0.0
    %901 = vmatprep.subr.mxu0 0.0
    %902 = vmatpush1.msra.mxu0 0.0
    %903 = vmatprep.subr.mxu0 0.0
    %904 = vmatpush1.msra.mxu0 0.0
    %905 = vmatprep.subr.mxu0 0.0
    %906 = vmatpush1.msra.mxu0 0.0
    %907 = vmatprep.subr.mxu0 0.0
    %908 = vmatpush1.msra.mxu0 0.0
    %909 = vmatprep.subr.mxu0 0.0
    %910 = vmatpush1.msra.mxu0 0.0
    %911 = vmatprep.subr.mxu0 0.0
    %912 = vmatpush1.msra.mxu0 0.0
    %913 = vmatprep.subr.mxu0 0.0
    %914 = vmatpush1.msra.mxu0 0.0
    %915 = vmatprep.subr.mxu0 0.0
    %916 = vmatpush1.msra.mxu0 0.0
    %v917 = vand.u32 %v329, 4294901760
    %v918 = vsub.f32 %v329, %v917
    %919 = vmatprep.mubr.f32.mxu0 %v918
    %v920 = vand.u32 %v256, 4294901760
    %v921 = vsub.f32 %v256, %v920
    %922 = vmatmul.mubr.f32.gmra.mrb[0].mxu0 %v921
    %v923 = vpop.f32.mrb[0].mxu0
    %v924 = vadd.f32 %v757, %v923
    %v925 = vpop.f32.mrb[0].mxu0
    %v926 = vadd.f32 %v759, %v925
    %927 = vdwg.mxu0
    %v928 = vand.u32 %v259, 4294901760
    %929 = vmatprep.subr.mxu0 %v928
    %v930 = vand.u32 %v258, 4294901760
    %931 = vmatpush1.msra.mxu0 %v930
    %v932 = vand.u32 %v262, 4294901760
    %933 = vmatprep.subr.mxu0 %v932
    %v934 = vand.u32 %v261, 4294901760
    %935 = vmatpush1.msra.mxu0 %v934
    %v936 = vand.u32 %v265, 4294901760
    %937 = vmatprep.subr.mxu0 %v936
    %v938 = vand.u32 %v264, 4294901760
    %939 = vmatpush1.msra.mxu0 %v938
    %v940 = vand.u32 %v268, 4294901760
    %941 = vmatprep.subr.mxu0 %v940
    %v942 = vand.u32 %v267, 4294901760
    %943 = vmatpush1.msra.mxu0 %v942
    %v944 = vand.u32 %v271, 4294901760
    %945 = vmatprep.subr.mxu0 %v944
    %v946 = vand.u32 %v270, 4294901760
    %947 = vmatpush1.msra.mxu0 %v946
    %v948 = vand.u32 %v274, 4294901760
    %949 = vmatprep.subr.mxu0 %v948
    %v950 = vand.u32 %v273, 4294901760
    %951 = vmatpush1.msra.mxu0 %v950
    %v952 = vand.u32 %v277, 4294901760
    %953 = vmatprep.subr.mxu0 %v952
    %v954 = vand.u32 %v276, 4294901760
    %955 = vmatpush1.msra.mxu0 %v954
    %v956 = vand.u32 %v280, 4294901760
    %957 = vmatprep.subr.mxu0 %v956
    %v958 = vand.u32 %v279, 4294901760
    %959 = vmatpush1.msra.mxu0 %v958
    %v960 = vand.u32 %v283, 4294901760
    %961 = vmatprep.subr.mxu0 %v960
    %v962 = vand.u32 %v282, 4294901760
    %963 = vmatpush1.msra.mxu0 %v962
    %v964 = vand.u32 %v286, 4294901760
    %965 = vmatprep.subr.mxu0 %v964
    %v966 = vand.u32 %v285, 4294901760
    %967 = vmatpush1.msra.mxu0 %v966
    %v968 = vand.u32 %v289, 4294901760
    %969 = vmatprep.subr.mxu0 %v968
    %v970 = vand.u32 %v288, 4294901760
    %971 = vmatpush1.msra.mxu0 %v970
    %v972 = vand.u32 %v292, 4294901760
    %973 = vmatprep.subr.mxu0 %v972
    %v974 = vand.u32 %v291, 4294901760
    %975 = vmatpush1.msra.mxu0 %v974
    %v976 = vand.u32 %v295, 4294901760
    %977 = vmatprep.subr.mxu0 %v976
    %v978 = vand.u32 %v294, 4294901760
    %979 = vmatpush1.msra.mxu0 %v978
    %v980 = vand.u32 %v298, 4294901760
    %981 = vmatprep.subr.mxu0 %v980
    %v982 = vand.u32 %v297, 4294901760
    %983 = vmatpush1.msra.mxu0 %v982
    %v984 = vand.u32 %v301, 4294901760
    %985 = vmatprep.subr.mxu0 %v984
    %v986 = vand.u32 %v300, 4294901760
    %987 = vmatpush1.msra.mxu0 %v986
    %v988 = vand.u32 %v304, 4294901760
    %989 = vmatprep.subr.mxu0 %v988
    %v990 = vand.u32 %v303, 4294901760
    %991 = vmatpush1.msra.mxu0 %v990
    %v992 = vand.u32 %v307, 4294901760
    %993 = vmatprep.subr.mxu0 %v992
    %v994 = vand.u32 %v306, 4294901760
    %995 = vmatpush1.msra.mxu0 %v994
    %v996 = vand.u32 %v310, 4294901760
    %997 = vmatprep.subr.mxu0 %v996
    %v998 = vand.u32 %v309, 4294901760
    %999 = vmatpush1.msra.mxu0 %v998
    %v1000 = vand.u32 %v313, 4294901760
    %1001 = vmatprep.subr.mxu0 %v1000
    %v1002 = vand.u32 %v312, 4294901760
    %1003 = vmatpush1.msra.mxu0 %v1002
    %v1004 = vand.u32 %v316, 4294901760
    %1005 = vmatprep.subr.mxu0 %v1004
    %v1006 = vand.u32 %v315, 4294901760
    %1007 = vmatpush1.msra.mxu0 %v1006
    %v1008 = vand.u32 %v319, 4294901760
    %1009 = vmatprep.subr.mxu0 %v1008
    %v1010 = vand.u32 %v318, 4294901760
    %1011 = vmatpush1.msra.mxu0 %v1010
    %v1012 = vand.u32 %v322, 4294901760
    %1013 = vmatprep.subr.mxu0 %v1012
    %v1014 = vand.u32 %v321, 4294901760
    %1015 = vmatpush1.msra.mxu0 %v1014
    %v1016 = vand.u32 %v325, 4294901760
    %1017 = vmatprep.subr.mxu0 %v1016
    %v1018 = vand.u32 %v324, 4294901760
    %1019 = vmatpush1.msra.mxu0 %v1018
    %1020 = vmatprep.subr.mxu0 0.0
    %1021 = vmatpush1.msra.mxu0 0.0
    %1022 = vmatprep.subr.mxu0 0.0
    %1023 = vmatpush1.msra.mxu0 0.0
    %1024 = vmatprep.subr.mxu0 0.0
    %1025 = vmatpush1.msra.mxu0 0.0
    %1026 = vmatprep.subr.mxu0 0.0
    %1027 = vmatpush1.msra.mxu0 0.0
    %1028 = vmatprep.subr.mxu0 0.0
    %1029 = vmatpush1.msra.mxu0 0.0
    %1030 = vmatprep.subr.mxu0 0.0
    %1031 = vmatpush1.msra.mxu0 0.0
    %1032 = vmatprep.subr.mxu0 0.0
    %1033 = vmatpush1.msra.mxu0 0.0
    %1034 = vmatprep.subr.mxu0 0.0
    %1035 = vmatpush1.msra.mxu0 0.0
    %1036 = vmatprep.subr.mxu0 0.0
    %1037 = vmatpush1.msra.mxu0 0.0
    %v1038 = vand.u32 %v329, 4294901760
    %v1039 = vsub.f32 %v329, %v1038
    %v1040 = vand.u32 %v1039, 4294901760
    %1041 = vmatprep.mubr.f32.mxu0 %v1040
    %v1042 = vand.u32 %v256, 4294901760
    %v1043 = vsub.f32 %v256, %v1042
    %v1044 = vand.u32 %v1043, 4294901760
    %1045 = vmatmul.mubr.f32.gmra.mrb[0].mxu0 %v1044
    %v1046 = vpop.f32.mrb[0].mxu0
    %v1047 = vadd.f32 %v924, %v1046
    %v1048 = vpop.f32.mrb[0].mxu0
    %v1049 = vadd.f32 %v926, %v1048
    %1050 = vdwg.mxu0
    %v1051 = vand.u32 %v259, 4294901760
    %v1052 = vsub.f32 %v259, %v1051
    %v1053 = vand.u32 %v1052, 4294901760
    %1054 = vmatprep.subr.mxu0 %v1053
    %v1055 = vand.u32 %v258, 4294901760
    %v1056 = vsub.f32 %v258, %v1055
    %v1057 = vand.u32 %v1056, 4294901760
    %1058 = vmatpush1.msra.mxu0 %v1057
    %v1059 = vand.u32 %v262, 4294901760
    %v1060 = vsub.f32 %v262, %v1059
    %v1061 = vand.u32 %v1060, 4294901760
    %1062 = vmatprep.subr.mxu0 %v1061
    %v1063 = vand.u32 %v261, 4294901760
    %v1064 = vsub.f32 %v261, %v1063
    %v1065 = vand.u32 %v1064, 4294901760
    %1066 = vmatpush1.msra.mxu0 %v1065
    %v1067 = vand.u32 %v265, 4294901760
    %v1068 = vsub.f32 %v265, %v1067
    %v1069 = vand.u32 %v1068, 4294901760
    %1070 = vmatprep.subr.mxu0 %v1069
    %v1071 = vand.u32 %v264, 4294901760
    %v1072 = vsub.f32 %v264, %v1071
    %v1073 = vand.u32 %v1072, 4294901760
    %1074 = vmatpush1.msra.mxu0 %v1073
    %v1075 = vand.u32 %v268, 4294901760
    %v1076 = vsub.f32 %v268, %v1075
    %v1077 = vand.u32 %v1076, 4294901760
    %1078 = vmatprep.subr.mxu0 %v1077
    %v1079 = vand.u32 %v267, 4294901760
    %v1080 = vsub.f32 %v267, %v1079
    %v1081 = vand.u32 %v1080, 4294901760
    %1082 = vmatpush1.msra.mxu0 %v1081
    %v1083 = vand.u32 %v271, 4294901760
    %v1084 = vsub.f32 %v271, %v1083
    %v1085 = vand.u32 %v1084, 4294901760
    %1086 = vmatprep.subr.mxu0 %v1085
    %v1087 = vand.u32 %v270, 4294901760
    %v1088 = vsub.f32 %v270, %v1087
    %v1089 = vand.u32 %v1088, 4294901760
    %1090 = vmatpush1.msra.mxu0 %v1089
    %v1091 = vand.u32 %v274, 4294901760
    %v1092 = vsub.f32 %v274, %v1091
    %v1093 = vand.u32 %v1092, 4294901760
    %1094 = vmatprep.subr.mxu0 %v1093
    %v1095 = vand.u32 %v273, 4294901760
    %v1096 = vsub.f32 %v273, %v1095
    %v1097 = vand.u32 %v1096, 4294901760
    %1098 = vmatpush1.msra.mxu0 %v1097
    %v1099 = vand.u32 %v277, 4294901760
    %v1100 = vsub.f32 %v277, %v1099
    %v1101 = vand.u32 %v1100, 4294901760
    %1102 = vmatprep.subr.mxu0 %v1101
    %v1103 = vand.u32 %v276, 4294901760
    %v1104 = vsub.f32 %v276, %v1103
    %v1105 = vand.u32 %v1104, 4294901760
    %1106 = vmatpush1.msra.mxu0 %v1105
    %v1107 = vand.u32 %v280, 4294901760
    %v1108 = vsub.f32 %v280, %v1107
    %v1109 = vand.u32 %v1108, 4294901760
    %1110 = vmatprep.subr.mxu0 %v1109
    %v1111 = vand.u32 %v279, 4294901760
    %v1112 = vsub.f32 %v279, %v1111
    %v1113 = vand.u32 %v1112, 4294901760
    %1114 = vmatpush1.msra.mxu0 %v1113
    %v1115 = vand.u32 %v283, 4294901760
    %v1116 = vsub.f32 %v283, %v1115
    %v1117 = vand.u32 %v1116, 4294901760
    %1118 = vmatprep.subr.mxu0 %v1117
    %v1119 = vand.u32 %v282, 4294901760
    %v1120 = vsub.f32 %v282, %v1119
    %v1121 = vand.u32 %v1120, 4294901760
    %1122 = vmatpush1.msra.mxu0 %v1121
    %v1123 = vand.u32 %v286, 4294901760
    %v1124 = vsub.f32 %v286, %v1123
    %v1125 = vand.u32 %v1124, 4294901760
    %1126 = vmatprep.subr.mxu0 %v1125
    %v1127 = vand.u32 %v285, 4294901760
    %v1128 = vsub.f32 %v285, %v1127
    %v1129 = vand.u32 %v1128, 4294901760
    %1130 = vmatpush1.msra.mxu0 %v1129
    %v1131 = vand.u32 %v289, 4294901760
    %v1132 = vsub.f32 %v289, %v1131
    %v1133 = vand.u32 %v1132, 4294901760
    %1134 = vmatprep.subr.mxu0 %v1133
    %v1135 = vand.u32 %v288, 4294901760
    %v1136 = vsub.f32 %v288, %v1135
    %v1137 = vand.u32 %v1136, 4294901760
    %1138 = vmatpush1.msra.mxu0 %v1137
    %v1139 = vand.u32 %v292, 4294901760
    %v1140 = vsub.f32 %v292, %v1139
    %v1141 = vand.u32 %v1140, 4294901760
    %1142 = vmatprep.subr.mxu0 %v1141
    %v1143 = vand.u32 %v291, 4294901760
    %v1144 = vsub.f32 %v291, %v1143
    %v1145 = vand.u32 %v1144, 4294901760
    %1146 = vmatpush1.msra.mxu0 %v1145
    %v1147 = vand.u32 %v295, 4294901760
    %v1148 = vsub.f32 %v295, %v1147
    %v1149 = vand.u32 %v1148, 4294901760
    %1150 = vmatprep.subr.mxu0 %v1149
    %v1151 = vand.u32 %v294, 4294901760
    %v1152 = vsub.f32 %v294, %v1151
    %v1153 = vand.u32 %v1152, 4294901760
    %1154 = vmatpush1.msra.mxu0 %v1153
    %v1155 = vand.u32 %v298, 4294901760
    %v1156 = vsub.f32 %v298, %v1155
    %v1157 = vand.u32 %v1156, 4294901760
    %1158 = vmatprep.subr.mxu0 %v1157
    %v1159 = vand.u32 %v297, 4294901760
    %v1160 = vsub.f32 %v297, %v1159
    %v1161 = vand.u32 %v1160, 4294901760
    %1162 = vmatpush1.msra.mxu0 %v1161
    %v1163 = vand.u32 %v301, 4294901760
    %v1164 = vsub.f32 %v301, %v1163
    %v1165 = vand.u32 %v1164, 4294901760
    %1166 = vmatprep.subr.mxu0 %v1165
    %v1167 = vand.u32 %v300, 4294901760
    %v1168 = vsub.f32 %v300, %v1167
    %v1169 = vand.u32 %v1168, 4294901760
    %1170 = vmatpush1.msra.mxu0 %v1169
    %v1171 = vand.u32 %v304, 4294901760
    %v1172 = vsub.f32 %v304, %v1171
    %v1173 = vand.u32 %v1172, 4294901760
    %1174 = vmatprep.subr.mxu0 %v1173
    %v1175 = vand.u32 %v303, 4294901760
    %v1176 = vsub.f32 %v303, %v1175
    %v1177 = vand.u32 %v1176, 4294901760
    %1178 = vmatpush1.msra.mxu0 %v1177
    %v1179 = vand.u32 %v307, 4294901760
    %v1180 = vsub.f32 %v307, %v1179
    %v1181 = vand.u32 %v1180, 4294901760
    %1182 = vmatprep.subr.mxu0 %v1181
    %v1183 = vand.u32 %v306, 4294901760
    %v1184 = vsub.f32 %v306, %v1183
    %v1185 = vand.u32 %v1184, 4294901760
    %1186 = vmatpush1.msra.mxu0 %v1185
    %v1187 = vand.u32 %v310, 4294901760
    %v1188 = vsub.f32 %v310, %v1187
    %v1189 = vand.u32 %v1188, 4294901760
    %1190 = vmatprep.subr.mxu0 %v1189
    %v1191 = vand.u32 %v309, 4294901760
    %v1192 = vsub.f32 %v309, %v1191
    %v1193 = vand.u32 %v1192, 4294901760
    %1194 = vmatpush1.msra.mxu0 %v1193
    %v1195 = vand.u32 %v313, 4294901760
    %v1196 = vsub.f32 %v313, %v1195
    %v1197 = vand.u32 %v1196, 4294901760
    %1198 = vmatprep.subr.mxu0 %v1197
    %v1199 = vand.u32 %v312, 4294901760
    %v1200 = vsub.f32 %v312, %v1199
    %v1201 = vand.u32 %v1200, 4294901760
    %1202 = vmatpush1.msra.mxu0 %v1201
    %v1203 = vand.u32 %v316, 4294901760
    %v1204 = vsub.f32 %v316, %v1203
    %v1205 = vand.u32 %v1204, 4294901760
    %1206 = vmatprep.subr.mxu0 %v1205
    %v1207 = vand.u32 %v315, 4294901760
    %v1208 = vsub.f32 %v315, %v1207
    %v1209 = vand.u32 %v1208, 4294901760
    %1210 = vmatpush1.msra.mxu0 %v1209
    %v1211 = vand.u32 %v319, 4294901760
    %v1212 = vsub.f32 %v319, %v1211
    %v1213 = vand.u32 %v1212, 4294901760
    %1214 = vmatprep.subr.mxu0 %v1213
    %v1215 = vand.u32 %v318, 4294901760
    %v1216 = vsub.f32 %v318, %v1215
    %v1217 = vand.u32 %v1216, 4294901760
    %1218 = vmatpush1.msra.mxu0 %v1217
    %v1219 = vand.u32 %v322, 4294901760
    %v1220 = vsub.f32 %v322, %v1219
    %v1221 = vand.u32 %v1220, 4294901760
    %1222 = vmatprep.subr.mxu0 %v1221
    %v1223 = vand.u32 %v321, 4294901760
    %v1224 = vsub.f32 %v321, %v1223
    %v1225 = vand.u32 %v1224, 4294901760
    %1226 = vmatpush1.msra.mxu0 %v1225
    %v1227 = vand.u32 %v325, 4294901760
    %v1228 = vsub.f32 %v325, %v1227
    %v1229 = vand.u32 %v1228, 4294901760
    %1230 = vmatprep.subr.mxu0 %v1229
    %v1231 = vand.u32 %v324, 4294901760
    %v1232 = vsub.f32 %v324, %v1231
    %v1233 = vand.u32 %v1232, 4294901760
    %1234 = vmatpush1.msra.mxu0 %v1233
    %1235 = vmatprep.subr.mxu0 0.0
    %1236 = vmatpush1.msra.mxu0 0.0
    %1237 = vmatprep.subr.mxu0 0.0
    %1238 = vmatpush1.msra.mxu0 0.0
    %1239 = vmatprep.subr.mxu0 0.0
    %1240 = vmatpush1.msra.mxu0 0.0
    %1241 = vmatprep.subr.mxu0 0.0
    %1242 = vmatpush1.msra.mxu0 0.0
    %1243 = vmatprep.subr.mxu0 0.0
    %1244 = vmatpush1.msra.mxu0 0.0
    %1245 = vmatprep.subr.mxu0 0.0
    %1246 = vmatpush1.msra.mxu0 0.0
    %1247 = vmatprep.subr.mxu0 0.0
    %1248 = vmatpush1.msra.mxu0 0.0
    %1249 = vmatprep.subr.mxu0 0.0
    %1250 = vmatpush1.msra.mxu0 0.0
    %1251 = vmatprep.subr.mxu0 0.0
    %1252 = vmatpush1.msra.mxu0 0.0
    %v1253 = vand.u32 %v329, 4294901760
    %1254 = vmatprep.mubr.f32.mxu0 %v1253
    %v1255 = vand.u32 %v256, 4294901760
    %1256 = vmatmul.mubr.f32.gmra.mrb[0].mxu0 %v1255
    %v1257 = vpop.f32.mrb[0].mxu0
    %v1258 = vadd.f32 %v1047, %v1257
    %v1259 = vpop.f32.mrb[0].mxu0
    %v1260 = vadd.f32 %v1049, %v1259
    %1261 = vdwg.mxu0
    %v1262 = vand.u32 %v259, 4294901760
    %1263 = vmatprep.subr.mxu0 %v1262
    %v1264 = vand.u32 %v258, 4294901760
    %1265 = vmatpush1.msra.mxu0 %v1264
    %v1266 = vand.u32 %v262, 4294901760
    %1267 = vmatprep.subr.mxu0 %v1266
    %v1268 = vand.u32 %v261, 4294901760
    %1269 = vmatpush1.msra.mxu0 %v1268
    %v1270 = vand.u32 %v265, 4294901760
    %1271 = vmatprep.subr.mxu0 %v1270
    %v1272 = vand.u32 %v264, 4294901760
    %1273 = vmatpush1.msra.mxu0 %v1272
    %v1274 = vand.u32 %v268, 4294901760
    %1275 = vmatprep.subr.mxu0 %v1274
    %v1276 = vand.u32 %v267, 4294901760
    %1277 = vmatpush1.msra.mxu0 %v1276
    %v1278 = vand.u32 %v271, 4294901760
    %1279 = vmatprep.subr.mxu0 %v1278
    %v1280 = vand.u32 %v270, 4294901760
    %1281 = vmatpush1.msra.mxu0 %v1280
    %v1282 = vand.u32 %v274, 4294901760
    %1283 = vmatprep.subr.mxu0 %v1282
    %v1284 = vand.u32 %v273, 4294901760
    %1285 = vmatpush1.msra.mxu0 %v1284
    %v1286 = vand.u32 %v277, 4294901760
    %1287 = vmatprep.subr.mxu0 %v1286
    %v1288 = vand.u32 %v276, 4294901760
    %1289 = vmatpush1.msra.mxu0 %v1288
    %v1290 = vand.u32 %v280, 4294901760
    %1291 = vmatprep.subr.mxu0 %v1290
    %v1292 = vand.u32 %v279, 4294901760
    %1293 = vmatpush1.msra.mxu0 %v1292
    %v1294 = vand.u32 %v283, 4294901760
    %1295 = vmatprep.subr.mxu0 %v1294
    %v1296 = vand.u32 %v282, 4294901760
    %1297 = vmatpush1.msra.mxu0 %v1296
    %v1298 = vand.u32 %v286, 4294901760
    %1299 = vmatprep.subr.mxu0 %v1298
    %v1300 = vand.u32 %v285, 4294901760
    %1301 = vmatpush1.msra.mxu0 %v1300
    %v1302 = vand.u32 %v289, 4294901760
    %1303 = vmatprep.subr.mxu0 %v1302
    %v1304 = vand.u32 %v288, 4294901760
    %1305 = vmatpush1.msra.mxu0 %v1304
    %v1306 = vand.u32 %v292, 4294901760
    %1307 = vmatprep.subr.mxu0 %v1306
    %v1308 = vand.u32 %v291, 4294901760
    %1309 = vmatpush1.msra.mxu0 %v1308
    %v1310 = vand.u32 %v295, 4294901760
    %1311 = vmatprep.subr.mxu0 %v1310
    %v1312 = vand.u32 %v294, 4294901760
    %1313 = vmatpush1.msra.mxu0 %v1312
    %v1314 = vand.u32 %v298, 4294901760
    %1315 = vmatprep.subr.mxu0 %v1314
    %v1316 = vand.u32 %v297, 4294901760
    %1317 = vmatpush1.msra.mxu0 %v1316
    %v1318 = vand.u32 %v301, 4294901760
    %1319 = vmatprep.subr.mxu0 %v1318
    %v1320 = vand.u32 %v300, 4294901760
    %1321 = vmatpush1.msra.mxu0 %v1320
    %v1322 = vand.u32 %v304, 4294901760
    %1323 = vmatprep.subr.mxu0 %v1322
    %v1324 = vand.u32 %v303, 4294901760
    %1325 = vmatpush1.msra.mxu0 %v1324
    %v1326 = vand.u32 %v307, 4294901760
    %1327 = vmatprep.subr.mxu0 %v1326
    %v1328 = vand.u32 %v306, 4294901760
    %1329 = vmatpush1.msra.mxu0 %v1328
    %v1330 = vand.u32 %v310, 4294901760
    %1331 = vmatprep.subr.mxu0 %v1330
    %v1332 = vand.u32 %v309, 4294901760
    %1333 = vmatpush1.msra.mxu0 %v1332
    %v1334 = vand.u32 %v313, 4294901760
    %1335 = vmatprep.subr.mxu0 %v1334
    %v1336 = vand.u32 %v312, 4294901760
    %1337 = vmatpush1.msra.mxu0 %v1336
    %v1338 = vand.u32 %v316, 4294901760
    %1339 = vmatprep.subr.mxu0 %v1338
    %v1340 = vand.u32 %v315, 4294901760
    %1341 = vmatpush1.msra.mxu0 %v1340
    %v1342 = vand.u32 %v319, 4294901760
    %1343 = vmatprep.subr.mxu0 %v1342
    %v1344 = vand.u32 %v318, 4294901760
    %1345 = vmatpush1.msra.mxu0 %v1344
    %v1346 = vand.u32 %v322, 4294901760
    %1347 = vmatprep.subr.mxu0 %v1346
    %v1348 = vand.u32 %v321, 4294901760
    %1349 = vmatpush1.msra.mxu0 %v1348
    %v1350 = vand.u32 %v325, 4294901760
    %1351 = vmatprep.subr.mxu0 %v1350
    %v1352 = vand.u32 %v324, 4294901760
    %1353 = vmatpush1.msra.mxu0 %v1352
    %1354 = vmatprep.subr.mxu0 0.0
    %1355 = vmatpush1.msra.mxu0 0.0
    %1356 = vmatprep.subr.mxu0 0.0
    %1357 = vmatpush1.msra.mxu0 0.0
    %1358 = vmatprep.subr.mxu0 0.0
    %1359 = vmatpush1.msra.mxu0 0.0
    %1360 = vmatprep.subr.mxu0 0.0
    %1361 = vmatpush1.msra.mxu0 0.0
    %1362 = vmatprep.subr.mxu0 0.0
    %1363 = vmatpush1.msra.mxu0 0.0
    %1364 = vmatprep.subr.mxu0 0.0
    %1365 = vmatpush1.msra.mxu0 0.0
    %1366 = vmatprep.subr.mxu0 0.0
    %1367 = vmatpush1.msra.mxu0 0.0
    %1368 = vmatprep.subr.mxu0 0.0
    %1369 = vmatpush1.msra.mxu0 0.0
    %1370 = vmatprep.subr.mxu0 0.0
    %1371 = vmatpush1.msra.mxu0 0.0
    %v1372 = vand.u32 %v329, 4294901760
    %1373 = vmatprep.mubr.f32.mxu0 %v1372
    %v1374 = vand.u32 %v256, 4294901760
    %1375 = vmatmul.mubr.f32.gmra.mrb[0].mxu0 %v1374
    %v1376 = vpop.f32.mrb[0].mxu0
    %v1377 = vadd.f32 %v1258, %v1376
    %v1378 = vpop.f32.mrb[0].mxu0
    %v1379 = vadd.f32 %v1260, %v1378
    %1380 = vdwg.mxu0
    %1381 = vmatprep.subr.mxu0 0.0
    %v1382 = vand.u32 %v260, 4294901760
    %1383 = vmatpush1.msra.mxu0 %v1382
    %1384 = vmatprep.subr.mxu0 0.0
    %v1385 = vand.u32 %v263, 4294901760
    %1386 = vmatpush1.msra.mxu0 %v1385
    %1387 = vmatprep.subr.mxu0 0.0
    %v1388 = vand.u32 %v266, 4294901760
    %1389 = vmatpush1.msra.mxu0 %v1388
    %1390 = vmatprep.subr.mxu0 0.0
    %v1391 = vand.u32 %v269, 4294901760
    %1392 = vmatpush1.msra.mxu0 %v1391
    %1393 = vmatprep.subr.mxu0 0.0
    %v1394 = vand.u32 %v272, 4294901760
    %1395 = vmatpush1.msra.mxu0 %v1394
    %1396 = vmatprep.subr.mxu0 0.0
    %v1397 = vand.u32 %v275, 4294901760
    %1398 = vmatpush1.msra.mxu0 %v1397
    %1399 = vmatprep.subr.mxu0 0.0
    %v1400 = vand.u32 %v278, 4294901760
    %1401 = vmatpush1.msra.mxu0 %v1400
    %1402 = vmatprep.subr.mxu0 0.0
    %v1403 = vand.u32 %v281, 4294901760
    %1404 = vmatpush1.msra.mxu0 %v1403
    %1405 = vmatprep.subr.mxu0 0.0
    %v1406 = vand.u32 %v284, 4294901760
    %1407 = vmatpush1.msra.mxu0 %v1406
    %1408 = vmatprep.subr.mxu0 0.0
    %v1409 = vand.u32 %v287, 4294901760
    %1410 = vmatpush1.msra.mxu0 %v1409
    %1411 = vmatprep.subr.mxu0 0.0
    %v1412 = vand.u32 %v290, 4294901760
    %1413 = vmatpush1.msra.mxu0 %v1412
    %1414 = vmatprep.subr.mxu0 0.0
    %v1415 = vand.u32 %v293, 4294901760
    %1416 = vmatpush1.msra.mxu0 %v1415
    %1417 = vmatprep.subr.mxu0 0.0
    %v1418 = vand.u32 %v296, 4294901760
    %1419 = vmatpush1.msra.mxu0 %v1418
    %1420 = vmatprep.subr.mxu0 0.0
    %v1421 = vand.u32 %v299, 4294901760
    %1422 = vmatpush1.msra.mxu0 %v1421
    %1423 = vmatprep.subr.mxu0 0.0
    %v1424 = vand.u32 %v302, 4294901760
    %1425 = vmatpush1.msra.mxu0 %v1424
    %1426 = vmatprep.subr.mxu0 0.0
    %v1427 = vand.u32 %v305, 4294901760
    %1428 = vmatpush1.msra.mxu0 %v1427
    %1429 = vmatprep.subr.mxu0 0.0
    %v1430 = vand.u32 %v308, 4294901760
    %1431 = vmatpush1.msra.mxu0 %v1430
    %1432 = vmatprep.subr.mxu0 0.0
    %v1433 = vand.u32 %v311, 4294901760
    %1434 = vmatpush1.msra.mxu0 %v1433
    %1435 = vmatprep.subr.mxu0 0.0
    %v1436 = vand.u32 %v314, 4294901760
    %1437 = vmatpush1.msra.mxu0 %v1436
    %1438 = vmatprep.subr.mxu0 0.0
    %v1439 = vand.u32 %v317, 4294901760
    %1440 = vmatpush1.msra.mxu0 %v1439
    %1441 = vmatprep.subr.mxu0 0.0
    %v1442 = vand.u32 %v320, 4294901760
    %1443 = vmatpush1.msra.mxu0 %v1442
    %1444 = vmatprep.subr.mxu0 0.0
    %v1445 = vand.u32 %v323, 4294901760
    %1446 = vmatpush1.msra.mxu0 %v1445
    %1447 = vmatprep.subr.mxu0 0.0
    %v1448 = vand.u32 %v326, 4294901760
    %1449 = vmatpush1.msra.mxu0 %v1448
    %1450 = vmatprep.subr.mxu0 0.0
    %1451 = vmatpush1.msra.mxu0 0.0
    %1452 = vmatprep.subr.mxu0 0.0
    %1453 = vmatpush1.msra.mxu0 0.0
    %1454 = vmatprep.subr.mxu0 0.0
    %1455 = vmatpush1.msra.mxu0 0.0
    %1456 = vmatprep.subr.mxu0 0.0
    %1457 = vmatpush1.msra.mxu0 0.0
    %1458 = vmatprep.subr.mxu0 0.0
    %1459 = vmatpush1.msra.mxu0 0.0
    %1460 = vmatprep.subr.mxu0 0.0
    %1461 = vmatpush1.msra.mxu0 0.0
    %1462 = vmatprep.subr.mxu0 0.0
    %1463 = vmatpush1.msra.mxu0 0.0
    %1464 = vmatprep.subr.mxu0 0.0
    %1465 = vmatpush1.msra.mxu0 0.0
    %1466 = vmatprep.subr.mxu0 0.0
    %1467 = vmatpush1.msra.mxu0 0.0
    %v1468 = vand.u32 %v329, 4294901760
    %v1469 = vsub.f32 %v329, %v1468
    %v1470 = vand.u32 %v1469, 4294901760
    %v1471 = vsub.f32 %v1469, %v1470
    %v1472 = vand.u32 %v1471, 4294901760
    %1473 = vmatprep.mubr.f32.mxu0 %v1472
    %v1474 = vand.u32 %v256, 4294901760
    %v1475 = vsub.f32 %v256, %v1474
    %v1476 = vand.u32 %v1475, 4294901760
    %v1477 = vsub.f32 %v1475, %v1476
    %v1478 = vand.u32 %v1477, 4294901760
    %1479 = vmatmul.mubr.f32.gmra.mrb[0].mxu0 %v1478
    %v1480 = vpop.f32.mrb[0].mxu0
    %v1481 = vadd.f32 0.0, %v1480
    %v1482 = vpop.f32.mrb[0].mxu0
    %1483 = vdwg.mxu0
    %1484 = vmatprep.subr.mxu0 0.0
    %v1485 = vand.u32 %v260, 4294901760
    %v1486 = vsub.f32 %v260, %v1485
    %v1487 = vand.u32 %v1486, 4294901760
    %v1488 = vsub.f32 %v1486, %v1487
    %v1489 = vand.u32 %v1488, 4294901760
    %1490 = vmatpush1.msra.mxu0 %v1489
    %1491 = vmatprep.subr.mxu0 0.0
    %v1492 = vand.u32 %v263, 4294901760
    %v1493 = vsub.f32 %v263, %v1492
    %v1494 = vand.u32 %v1493, 4294901760
    %v1495 = vsub.f32 %v1493, %v1494
    %v1496 = vand.u32 %v1495, 4294901760
    %1497 = vmatpush1.msra.mxu0 %v1496
    %1498 = vmatprep.subr.mxu0 0.0
    %v1499 = vand.u32 %v266, 4294901760
    %v1500 = vsub.f32 %v266, %v1499
    %v1501 = vand.u32 %v1500, 4294901760
    %v1502 = vsub.f32 %v1500, %v1501
    %v1503 = vand.u32 %v1502, 4294901760
    %1504 = vmatpush1.msra.mxu0 %v1503
    %1505 = vmatprep.subr.mxu0 0.0
    %v1506 = vand.u32 %v269, 4294901760
    %v1507 = vsub.f32 %v269, %v1506
    %v1508 = vand.u32 %v1507, 4294901760
    %v1509 = vsub.f32 %v1507, %v1508
    %v1510 = vand.u32 %v1509, 4294901760
    %1511 = vmatpush1.msra.mxu0 %v1510
    %1512 = vmatprep.subr.mxu0 0.0
    %v1513 = vand.u32 %v272, 4294901760
    %v1514 = vsub.f32 %v272, %v1513
    %v1515 = vand.u32 %v1514, 4294901760
    %v1516 = vsub.f32 %v1514, %v1515
    %v1517 = vand.u32 %v1516, 4294901760
    %1518 = vmatpush1.msra.mxu0 %v1517
    %1519 = vmatprep.subr.mxu0 0.0
    %v1520 = vand.u32 %v275, 4294901760
    %v1521 = vsub.f32 %v275, %v1520
    %v1522 = vand.u32 %v1521, 4294901760
    %v1523 = vsub.f32 %v1521, %v1522
    %v1524 = vand.u32 %v1523, 4294901760
    %1525 = vmatpush1.msra.mxu0 %v1524
    %1526 = vmatprep.subr.mxu0 0.0
    %v1527 = vand.u32 %v278, 4294901760
    %v1528 = vsub.f32 %v278, %v1527
    %v1529 = vand.u32 %v1528, 4294901760
    %v1530 = vsub.f32 %v1528, %v1529
    %v1531 = vand.u32 %v1530, 4294901760
    %1532 = vmatpush1.msra.mxu0 %v1531
    %1533 = vmatprep.subr.mxu0 0.0
    %v1534 = vand.u32 %v281, 4294901760
    %v1535 = vsub.f32 %v281, %v1534
    %v1536 = vand.u32 %v1535, 4294901760
    %v1537 = vsub.f32 %v1535, %v1536
    %v1538 = vand.u32 %v1537, 4294901760
    %1539 = vmatpush1.msra.mxu0 %v1538
    %1540 = vmatprep.subr.mxu0 0.0
    %v1541 = vand.u32 %v284, 4294901760
    %v1542 = vsub.f32 %v284, %v1541
    %v1543 = vand.u32 %v1542, 4294901760
    %v1544 = vsub.f32 %v1542, %v1543
    %v1545 = vand.u32 %v1544, 4294901760
    %1546 = vmatpush1.msra.mxu0 %v1545
    %1547 = vmatprep.subr.mxu0 0.0
    %v1548 = vand.u32 %v287, 4294901760
    %v1549 = vsub.f32 %v287, %v1548
    %v1550 = vand.u32 %v1549, 4294901760
    %v1551 = vsub.f32 %v1549, %v1550
    %v1552 = vand.u32 %v1551, 4294901760
    %1553 = vmatpush1.msra.mxu0 %v1552
    %1554 = vmatprep.subr.mxu0 0.0
    %v1555 = vand.u32 %v290, 4294901760
    %v1556 = vsub.f32 %v290, %v1555
    %v1557 = vand.u32 %v1556, 4294901760
    %v1558 = vsub.f32 %v1556, %v1557
    %v1559 = vand.u32 %v1558, 4294901760
    %1560 = vmatpush1.msra.mxu0 %v1559
    %1561 = vmatprep.subr.mxu0 0.0
    %v1562 = vand.u32 %v293, 4294901760
    %v1563 = vsub.f32 %v293, %v1562
    %v1564 = vand.u32 %v1563, 4294901760
    %v1565 = vsub.f32 %v1563, %v1564
    %v1566 = vand.u32 %v1565, 4294901760
    %1567 = vmatpush1.msra.mxu0 %v1566
    %1568 = vmatprep.subr.mxu0 0.0
    %v1569 = vand.u32 %v296, 4294901760
    %v1570 = vsub.f32 %v296, %v1569
    %v1571 = vand.u32 %v1570, 4294901760
    %v1572 = vsub.f32 %v1570, %v1571
    %v1573 = vand.u32 %v1572, 4294901760
    %1574 = vmatpush1.msra.mxu0 %v1573
    %1575 = vmatprep.subr.mxu0 0.0
    %v1576 = vand.u32 %v299, 4294901760
    %v1577 = vsub.f32 %v299, %v1576
    %v1578 = vand.u32 %v1577, 4294901760
    %v1579 = vsub.f32 %v1577, %v1578
    %v1580 = vand.u32 %v1579, 4294901760
    %1581 = vmatpush1.msra.mxu0 %v1580
    %1582 = vmatprep.subr.mxu0 0.0
    %v1583 = vand.u32 %v302, 4294901760
    %v1584 = vsub.f32 %v302, %v1583
    %v1585 = vand.u32 %v1584, 4294901760
    %v1586 = vsub.f32 %v1584, %v1585
    %v1587 = vand.u32 %v1586, 4294901760
    %1588 = vmatpush1.msra.mxu0 %v1587
    %1589 = vmatprep.subr.mxu0 0.0
    %v1590 = vand.u32 %v305, 4294901760
    %v1591 = vsub.f32 %v305, %v1590
    %v1592 = vand.u32 %v1591, 4294901760
    %v1593 = vsub.f32 %v1591, %v1592
    %v1594 = vand.u32 %v1593, 4294901760
    %1595 = vmatpush1.msra.mxu0 %v1594
    %1596 = vmatprep.subr.mxu0 0.0
    %v1597 = vand.u32 %v308, 4294901760
    %v1598 = vsub.f32 %v308, %v1597
    %v1599 = vand.u32 %v1598, 4294901760
    %v1600 = vsub.f32 %v1598, %v1599
    %v1601 = vand.u32 %v1600, 4294901760
    %1602 = vmatpush1.msra.mxu0 %v1601
    %1603 = vmatprep.subr.mxu0 0.0
    %v1604 = vand.u32 %v311, 4294901760
    %v1605 = vsub.f32 %v311, %v1604
    %v1606 = vand.u32 %v1605, 4294901760
    %v1607 = vsub.f32 %v1605, %v1606
    %v1608 = vand.u32 %v1607, 4294901760
    %1609 = vmatpush1.msra.mxu0 %v1608
    %1610 = vmatprep.subr.mxu0 0.0
    %v1611 = vand.u32 %v314, 4294901760
    %v1612 = vsub.f32 %v314, %v1611
    %v1613 = vand.u32 %v1612, 4294901760
    %v1614 = vsub.f32 %v1612, %v1613
    %v1615 = vand.u32 %v1614, 4294901760
    %1616 = vmatpush1.msra.mxu0 %v1615
    %1617 = vmatprep.subr.mxu0 0.0
    %v1618 = vand.u32 %v317, 4294901760
    %v1619 = vsub.f32 %v317, %v1618
    %v1620 = vand.u32 %v1619, 4294901760
    %v1621 = vsub.f32 %v1619, %v1620
    %v1622 = vand.u32 %v1621, 4294901760
    %1623 = vmatpush1.msra.mxu0 %v1622
    %1624 = vmatprep.subr.mxu0 0.0
    %v1625 = vand.u32 %v320, 4294901760
    %v1626 = vsub.f32 %v320, %v1625
    %v1627 = vand.u32 %v1626, 4294901760
    %v1628 = vsub.f32 %v1626, %v1627
    %v1629 = vand.u32 %v1628, 4294901760
    %1630 = vmatpush1.msra.mxu0 %v1629
    %1631 = vmatprep.subr.mxu0 0.0
    %v1632 = vand.u32 %v323, 4294901760
    %v1633 = vsub.f32 %v323, %v1632
    %v1634 = vand.u32 %v1633, 4294901760
    %v1635 = vsub.f32 %v1633, %v1634
    %v1636 = vand.u32 %v1635, 4294901760
    %1637 = vmatpush1.msra.mxu0 %v1636
    %1638 = vmatprep.subr.mxu0 0.0
    %v1639 = vand.u32 %v326, 4294901760
    %v1640 = vsub.f32 %v326, %v1639
    %v1641 = vand.u32 %v1640, 4294901760
    %v1642 = vsub.f32 %v1640, %v1641
    %v1643 = vand.u32 %v1642, 4294901760
    %1644 = vmatpush1.msra.mxu0 %v1643
    %1645 = vmatprep.subr.mxu0 0.0
    %1646 = vmatpush1.msra.mxu0 0.0
    %1647 = vmatprep.subr.mxu0 0.0
    %1648 = vmatpush1.msra.mxu0 0.0
    %1649 = vmatprep.subr.mxu0 0.0
    %1650 = vmatpush1.msra.mxu0 0.0
    %1651 = vmatprep.subr.mxu0 0.0
    %1652 = vmatpush1.msra.mxu0 0.0
    %1653 = vmatprep.subr.mxu0 0.0
    %1654 = vmatpush1.msra.mxu0 0.0
    %1655 = vmatprep.subr.mxu0 0.0
    %1656 = vmatpush1.msra.mxu0 0.0
    %1657 = vmatprep.subr.mxu0 0.0
    %1658 = vmatpush1.msra.mxu0 0.0
    %1659 = vmatprep.subr.mxu0 0.0
    %1660 = vmatpush1.msra.mxu0 0.0
    %1661 = vmatprep.subr.mxu0 0.0
    %1662 = vmatpush1.msra.mxu0 0.0
    %v1663 = vand.u32 %v329, 4294901760
    %1664 = vmatprep.mubr.f32.mxu0 %v1663
    %v1665 = vand.u32 %v256, 4294901760
    %1666 = vmatmul.mubr.f32.gmra.mrb[0].mxu0 %v1665
    %v1667 = vpop.f32.mrb[0].mxu0
    %v1668 = vadd.f32 %v1481, %v1667
    %v1669 = vpop.f32.mrb[0].mxu0
    %1670 = vdwg.mxu0
    %1671 = vmatprep.subr.mxu0 0.0
    %v1672 = vand.u32 %v260, 4294901760
    %v1673 = vsub.f32 %v260, %v1672
    %1674 = vmatpush1.msra.mxu0 %v1673
    %1675 = vmatprep.subr.mxu0 0.0
    %v1676 = vand.u32 %v263, 4294901760
    %v1677 = vsub.f32 %v263, %v1676
    %1678 = vmatpush1.msra.mxu0 %v1677
    %1679 = vmatprep.subr.mxu0 0.0
    %v1680 = vand.u32 %v266, 4294901760
    %v1681 = vsub.f32 %v266, %v1680
    %1682 = vmatpush1.msra.mxu0 %v1681
    %1683 = vmatprep.subr.mxu0 0.0
    %v1684 = vand.u32 %v269, 4294901760
    %v1685 = vsub.f32 %v269, %v1684
    %1686 = vmatpush1.msra.mxu0 %v1685
    %1687 = vmatprep.subr.mxu0 0.0
    %v1688 = vand.u32 %v272, 4294901760
    %v1689 = vsub.f32 %v272, %v1688
    %1690 = vmatpush1.msra.mxu0 %v1689
    %1691 = vmatprep.subr.mxu0 0.0
    %v1692 = vand.u32 %v275, 4294901760
    %v1693 = vsub.f32 %v275, %v1692
    %1694 = vmatpush1.msra.mxu0 %v1693
    %1695 = vmatprep.subr.mxu0 0.0
    %v1696 = vand.u32 %v278, 4294901760
    %v1697 = vsub.f32 %v278, %v1696
    %1698 = vmatpush1.msra.mxu0 %v1697
    %1699 = vmatprep.subr.mxu0 0.0
    %v1700 = vand.u32 %v281, 4294901760
    %v1701 = vsub.f32 %v281, %v1700
    %1702 = vmatpush1.msra.mxu0 %v1701
    %1703 = vmatprep.subr.mxu0 0.0
    %v1704 = vand.u32 %v284, 4294901760
    %v1705 = vsub.f32 %v284, %v1704
    %1706 = vmatpush1.msra.mxu0 %v1705
    %1707 = vmatprep.subr.mxu0 0.0
    %v1708 = vand.u32 %v287, 4294901760
    %v1709 = vsub.f32 %v287, %v1708
    %1710 = vmatpush1.msra.mxu0 %v1709
    %1711 = vmatprep.subr.mxu0 0.0
    %v1712 = vand.u32 %v290, 4294901760
    %v1713 = vsub.f32 %v290, %v1712
    %1714 = vmatpush1.msra.mxu0 %v1713
    %1715 = vmatprep.subr.mxu0 0.0
    %v1716 = vand.u32 %v293, 4294901760
    %v1717 = vsub.f32 %v293, %v1716
    %1718 = vmatpush1.msra.mxu0 %v1717
    %1719 = vmatprep.subr.mxu0 0.0
    %v1720 = vand.u32 %v296, 4294901760
    %v1721 = vsub.f32 %v296, %v1720
    %1722 = vmatpush1.msra.mxu0 %v1721
    %1723 = vmatprep.subr.mxu0 0.0
    %v1724 = vand.u32 %v299, 4294901760
    %v1725 = vsub.f32 %v299, %v1724
    %1726 = vmatpush1.msra.mxu0 %v1725
    %1727 = vmatprep.subr.mxu0 0.0
    %v1728 = vand.u32 %v302, 4294901760
    %v1729 = vsub.f32 %v302, %v1728
    %1730 = vmatpush1.msra.mxu0 %v1729
    %1731 = vmatprep.subr.mxu0 0.0
    %v1732 = vand.u32 %v305, 4294901760
    %v1733 = vsub.f32 %v305, %v1732
    %1734 = vmatpush1.msra.mxu0 %v1733
    %1735 = vmatprep.subr.mxu0 0.0
    %v1736 = vand.u32 %v308, 4294901760
    %v1737 = vsub.f32 %v308, %v1736
    %1738 = vmatpush1.msra.mxu0 %v1737
    %1739 = vmatprep.subr.mxu0 0.0
    %v1740 = vand.u32 %v311, 4294901760
    %v1741 = vsub.f32 %v311, %v1740
    %1742 = vmatpush1.msra.mxu0 %v1741
    %1743 = vmatprep.subr.mxu0 0.0
    %v1744 = vand.u32 %v314, 4294901760
    %v1745 = vsub.f32 %v314, %v1744
    %1746 = vmatpush1.msra.mxu0 %v1745
    %1747 = vmatprep.subr.mxu0 0.0
    %v1748 = vand.u32 %v317, 4294901760
    %v1749 = vsub.f32 %v317, %v1748
    %1750 = vmatpush1.msra.mxu0 %v1749
    %1751 = vmatprep.subr.mxu0 0.0
    %v1752 = vand.u32 %v320, 4294901760
    %v1753 = vsub.f32 %v320, %v1752
    %1754 = vmatpush1.msra.mxu0 %v1753
    %1755 = vmatprep.subr.mxu0 0.0
    %v1756 = vand.u32 %v323, 4294901760
    %v1757 = vsub.f32 %v323, %v1756
    %1758 = vmatpush1.msra.mxu0 %v1757
    %1759 = vmatprep.subr.mxu0 0.0
    %v1760 = vand.u32 %v326, 4294901760
    %v1761 = vsub.f32 %v326, %v1760
    %1762 = vmatpush1.msra.mxu0 %v1761
    %1763 = vmatprep.subr.mxu0 0.0
    %1764 = vmatpush1.msra.mxu0 0.0
    %1765 = vmatprep.subr.mxu0 0.0
    %1766 = vmatpush1.msra.mxu0 0.0
    %1767 = vmatprep.subr.mxu0 0.0
    %1768 = vmatpush1.msra.mxu0 0.0
    %1769 = vmatprep.subr.mxu0 0.0
    %1770 = vmatpush1.msra.mxu0 0.0
    %1771 = vmatprep.subr.mxu0 0.0
    %1772 = vmatpush1.msra.mxu0 0.0
    %1773 = vmatprep.subr.mxu0 0.0
    %1774 = vmatpush1.msra.mxu0 0.0
    %1775 = vmatprep.subr.mxu0 0.0
    %1776 = vmatpush1.msra.mxu0 0.0
    %1777 = vmatprep.subr.mxu0 0.0
    %1778 = vmatpush1.msra.mxu0 0.0
    %1779 = vmatprep.subr.mxu0 0.0
    %1780 = vmatpush1.msra.mxu0 0.0
    %v1781 = vand.u32 %v329, 4294901760
    %v1782 = vsub.f32 %v329, %v1781
    %1783 = vmatprep.mubr.f32.mxu0 %v1782
    %v1784 = vand.u32 %v256, 4294901760
    %v1785 = vsub.f32 %v256, %v1784
    %1786 = vmatmul.mubr.f32.gmra.mrb[0].mxu0 %v1785
    %v1787 = vpop.f32.mrb[0].mxu0
    %v1788 = vadd.f32 %v1668, %v1787
    %v1789 = vpop.f32.mrb[0].mxu0
    %1790 = vdwg.mxu0
    %1791 = vmatprep.subr.mxu0 0.0
    %v1792 = vand.u32 %v260, 4294901760
    %1793 = vmatpush1.msra.mxu0 %v1792
    %1794 = vmatprep.subr.mxu0 0.0
    %v1795 = vand.u32 %v263, 4294901760
    %1796 = vmatpush1.msra.mxu0 %v1795
    %1797 = vmatprep.subr.mxu0 0.0
    %v1798 = vand.u32 %v266, 4294901760
    %1799 = vmatpush1.msra.mxu0 %v1798
    %1800 = vmatprep.subr.mxu0 0.0
    %v1801 = vand.u32 %v269, 4294901760
    %1802 = vmatpush1.msra.mxu0 %v1801
    %1803 = vmatprep.subr.mxu0 0.0
    %v1804 = vand.u32 %v272, 4294901760
    %1805 = vmatpush1.msra.mxu0 %v1804
    %1806 = vmatprep.subr.mxu0 0.0
    %v1807 = vand.u32 %v275, 4294901760
    %1808 = vmatpush1.msra.mxu0 %v1807
    %1809 = vmatprep.subr.mxu0 0.0
    %v1810 = vand.u32 %v278, 4294901760
    %1811 = vmatpush1.msra.mxu0 %v1810
    %1812 = vmatprep.subr.mxu0 0.0
    %v1813 = vand.u32 %v281, 4294901760
    %1814 = vmatpush1.msra.mxu0 %v1813
    %1815 = vmatprep.subr.mxu0 0.0
    %v1816 = vand.u32 %v284, 4294901760
    %1817 = vmatpush1.msra.mxu0 %v1816
    %1818 = vmatprep.subr.mxu0 0.0
    %v1819 = vand.u32 %v287, 4294901760
    %1820 = vmatpush1.msra.mxu0 %v1819
    %1821 = vmatprep.subr.mxu0 0.0
    %v1822 = vand.u32 %v290, 4294901760
    %1823 = vmatpush1.msra.mxu0 %v1822
    %1824 = vmatprep.subr.mxu0 0.0
    %v1825 = vand.u32 %v293, 4294901760
    %1826 = vmatpush1.msra.mxu0 %v1825
    %1827 = vmatprep.subr.mxu0 0.0
    %v1828 = vand.u32 %v296, 4294901760
    %1829 = vmatpush1.msra.mxu0 %v1828
    %1830 = vmatprep.subr.mxu0 0.0
    %v1831 = vand.u32 %v299, 4294901760
    %1832 = vmatpush1.msra.mxu0 %v1831
    %1833 = vmatprep.subr.mxu0 0.0
    %v1834 = vand.u32 %v302, 4294901760
    %1835 = vmatpush1.msra.mxu0 %v1834
    %1836 = vmatprep.subr.mxu0 0.0
    %v1837 = vand.u32 %v305, 4294901760
    %1838 = vmatpush1.msra.mxu0 %v1837
    %1839 = vmatprep.subr.mxu0 0.0
    %v1840 = vand.u32 %v308, 4294901760
    %1841 = vmatpush1.msra.mxu0 %v1840
    %1842 = vmatprep.subr.mxu0 0.0
    %v1843 = vand.u32 %v311, 4294901760
    %1844 = vmatpush1.msra.mxu0 %v1843
    %1845 = vmatprep.subr.mxu0 0.0
    %v1846 = vand.u32 %v314, 4294901760
    %1847 = vmatpush1.msra.mxu0 %v1846
    %1848 = vmatprep.subr.mxu0 0.0
    %v1849 = vand.u32 %v317, 4294901760
    %1850 = vmatpush1.msra.mxu0 %v1849
    %1851 = vmatprep.subr.mxu0 0.0
    %v1852 = vand.u32 %v320, 4294901760
    %1853 = vmatpush1.msra.mxu0 %v1852
    %1854 = vmatprep.subr.mxu0 0.0
    %v1855 = vand.u32 %v323, 4294901760
    %1856 = vmatpush1.msra.mxu0 %v1855
    %1857 = vmatprep.subr.mxu0 0.0
    %v1858 = vand.u32 %v326, 4294901760
    %1859 = vmatpush1.msra.mxu0 %v1858
    %1860 = vmatprep.subr.mxu0 0.0
    %1861 = vmatpush1.msra.mxu0 0.0
    %1862 = vmatprep.subr.mxu0 0.0
    %1863 = vmatpush1.msra.mxu0 0.0
    %1864 = vmatprep.subr.mxu0 0.0
    %1865 = vmatpush1.msra.mxu0 0.0
    %1866 = vmatprep.subr.mxu0 0.0
    %1867 = vmatpush1.msra.mxu0 0.0
    %1868 = vmatprep.subr.mxu0 0.0
    %1869 = vmatpush1.msra.mxu0 0.0
    %1870 = vmatprep.subr.mxu0 0.0
    %1871 = vmatpush1.msra.mxu0 0.0
    %1872 = vmatprep.subr.mxu0 0.0
    %1873 = vmatpush1.msra.mxu0 0.0
    %1874 = vmatprep.subr.mxu0 0.0
    %1875 = vmatpush1.msra.mxu0 0.0
    %1876 = vmatprep.subr.mxu0 0.0
    %1877 = vmatpush1.msra.mxu0 0.0
    %v1878 = vand.u32 %v329, 4294901760
    %v1879 = vsub.f32 %v329, %v1878
    %v1880 = vand.u32 %v1879, 4294901760
    %1881 = vmatprep.mubr.f32.mxu0 %v1880
    %v1882 = vand.u32 %v256, 4294901760
    %v1883 = vsub.f32 %v256, %v1882
    %v1884 = vand.u32 %v1883, 4294901760
    %1885 = vmatmul.mubr.f32.gmra.mrb[0].mxu0 %v1884
    %v1886 = vpop.f32.mrb[0].mxu0
    %v1887 = vadd.f32 %v1788, %v1886
    %v1888 = vpop.f32.mrb[0].mxu0
    %1889 = vdwg.mxu0
    %1890 = vmatprep.subr.mxu0 0.0
    %v1891 = vand.u32 %v260, 4294901760
    %v1892 = vsub.f32 %v260, %v1891
    %v1893 = vand.u32 %v1892, 4294901760
    %1894 = vmatpush1.msra.mxu0 %v1893
    %1895 = vmatprep.subr.mxu0 0.0
    %v1896 = vand.u32 %v263, 4294901760
    %v1897 = vsub.f32 %v263, %v1896
    %v1898 = vand.u32 %v1897, 4294901760
    %1899 = vmatpush1.msra.mxu0 %v1898
    %1900 = vmatprep.subr.mxu0 0.0
    %v1901 = vand.u32 %v266, 4294901760
    %v1902 = vsub.f32 %v266, %v1901
    %v1903 = vand.u32 %v1902, 4294901760
    %1904 = vmatpush1.msra.mxu0 %v1903
    %1905 = vmatprep.subr.mxu0 0.0
    %v1906 = vand.u32 %v269, 4294901760
    %v1907 = vsub.f32 %v269, %v1906
    %v1908 = vand.u32 %v1907, 4294901760
    %1909 = vmatpush1.msra.mxu0 %v1908
    %1910 = vmatprep.subr.mxu0 0.0
    %v1911 = vand.u32 %v272, 4294901760
    %v1912 = vsub.f32 %v272, %v1911
    %v1913 = vand.u32 %v1912, 4294901760
    %1914 = vmatpush1.msra.mxu0 %v1913
    %1915 = vmatprep.subr.mxu0 0.0
    %v1916 = vand.u32 %v275, 4294901760
    %v1917 = vsub.f32 %v275, %v1916
    %v1918 = vand.u32 %v1917, 4294901760
    %1919 = vmatpush1.msra.mxu0 %v1918
    %1920 = vmatprep.subr.mxu0 0.0
    %v1921 = vand.u32 %v278, 4294901760
    %v1922 = vsub.f32 %v278, %v1921
    %v1923 = vand.u32 %v1922, 4294901760
    %1924 = vmatpush1.msra.mxu0 %v1923
    %1925 = vmatprep.subr.mxu0 0.0
    %v1926 = vand.u32 %v281, 4294901760
    %v1927 = vsub.f32 %v281, %v1926
    %v1928 = vand.u32 %v1927, 4294901760
    %1929 = vmatpush1.msra.mxu0 %v1928
    %1930 = vmatprep.subr.mxu0 0.0
    %v1931 = vand.u32 %v284, 4294901760
    %v1932 = vsub.f32 %v284, %v1931
    %v1933 = vand.u32 %v1932, 4294901760
    %1934 = vmatpush1.msra.mxu0 %v1933
    %1935 = vmatprep.subr.mxu0 0.0
    %v1936 = vand.u32 %v287, 4294901760
    %v1937 = vsub.f32 %v287, %v1936
    %v1938 = vand.u32 %v1937, 4294901760
    %1939 = vmatpush1.msra.mxu0 %v1938
    %1940 = vmatprep.subr.mxu0 0.0
    %v1941 = vand.u32 %v290, 4294901760
    %v1942 = vsub.f32 %v290, %v1941
    %v1943 = vand.u32 %v1942, 4294901760
    %1944 = vmatpush1.msra.mxu0 %v1943
    %1945 = vmatprep.subr.mxu0 0.0
    %v1946 = vand.u32 %v293, 4294901760
    %v1947 = vsub.f32 %v293, %v1946
    %v1948 = vand.u32 %v1947, 4294901760
    %1949 = vmatpush1.msra.mxu0 %v1948
    %1950 = vmatprep.subr.mxu0 0.0
    %v1951 = vand.u32 %v296, 4294901760
    %v1952 = vsub.f32 %v296, %v1951
    %v1953 = vand.u32 %v1952, 4294901760
    %1954 = vmatpush1.msra.mxu0 %v1953
    %1955 = vmatprep.subr.mxu0 0.0
    %v1956 = vand.u32 %v299, 4294901760
    %v1957 = vsub.f32 %v299, %v1956
    %v1958 = vand.u32 %v1957, 4294901760
    %1959 = vmatpush1.msra.mxu0 %v1958
    %1960 = vmatprep.subr.mxu0 0.0
    %v1961 = vand.u32 %v302, 4294901760
    %v1962 = vsub.f32 %v302, %v1961
    %v1963 = vand.u32 %v1962, 4294901760
    %1964 = vmatpush1.msra.mxu0 %v1963
    %1965 = vmatprep.subr.mxu0 0.0
    %v1966 = vand.u32 %v305, 4294901760
    %v1967 = vsub.f32 %v305, %v1966
    %v1968 = vand.u32 %v1967, 4294901760
    %1969 = vmatpush1.msra.mxu0 %v1968
    %1970 = vmatprep.subr.mxu0 0.0
    %v1971 = vand.u32 %v308, 4294901760
    %v1972 = vsub.f32 %v308, %v1971
    %v1973 = vand.u32 %v1972, 4294901760
    %1974 = vmatpush1.msra.mxu0 %v1973
    %1975 = vmatprep.subr.mxu0 0.0
    %v1976 = vand.u32 %v311, 4294901760
    %v1977 = vsub.f32 %v311, %v1976
    %v1978 = vand.u32 %v1977, 4294901760
    %1979 = vmatpush1.msra.mxu0 %v1978
    %1980 = vmatprep.subr.mxu0 0.0
    %v1981 = vand.u32 %v314, 4294901760
    %v1982 = vsub.f32 %v314, %v1981
    %v1983 = vand.u32 %v1982, 4294901760
    %1984 = vmatpush1.msra.mxu0 %v1983
    %1985 = vmatprep.subr.mxu0 0.0
    %v1986 = vand.u32 %v317, 4294901760
    %v1987 = vsub.f32 %v317, %v1986
    %v1988 = vand.u32 %v1987, 4294901760
    %1989 = vmatpush1.msra.mxu0 %v1988
    %1990 = vmatprep.subr.mxu0 0.0
    %v1991 = vand.u32 %v320, 4294901760
    %v1992 = vsub.f32 %v320, %v1991
    %v1993 = vand.u32 %v1992, 4294901760
    %1994 = vmatpush1.msra.mxu0 %v1993
    %1995 = vmatprep.subr.mxu0 0.0
    %v1996 = vand.u32 %v323, 4294901760
    %v1997 = vsub.f32 %v323, %v1996
    %v1998 = vand.u32 %v1997, 4294901760
    %1999 = vmatpush1.msra.mxu0 %v1998
    %2000 = vmatprep.subr.mxu0 0.0
    %v2001 = vand.u32 %v326, 4294901760
    %v2002 = vsub.f32 %v326, %v2001
    %v2003 = vand.u32 %v2002, 4294901760
    %2004 = vmatpush1.msra.mxu0 %v2003
    %2005 = vmatprep.subr.mxu0 0.0
    %2006 = vmatpush1.msra.mxu0 0.0
    %2007 = vmatprep.subr.mxu0 0.0
    %2008 = vmatpush1.msra.mxu0 0.0
    %2009 = vmatprep.subr.mxu0 0.0
    %2010 = vmatpush1.msra.mxu0 0.0
    %2011 = vmatprep.subr.mxu0 0.0
    %2012 = vmatpush1.msra.mxu0 0.0
    %2013 = vmatprep.subr.mxu0 0.0
    %2014 = vmatpush1.msra.mxu0 0.0
    %2015 = vmatprep.subr.mxu0 0.0
    %2016 = vmatpush1.msra.mxu0 0.0
    %2017 = vmatprep.subr.mxu0 0.0
    %2018 = vmatpush1.msra.mxu0 0.0
    %2019 = vmatprep.subr.mxu0 0.0
    %2020 = vmatpush1.msra.mxu0 0.0
    %2021 = vmatprep.subr.mxu0 0.0
    %2022 = vmatpush1.msra.mxu0 0.0
    %v2023 = vand.u32 %v329, 4294901760
    %2024 = vmatprep.mubr.f32.mxu0 %v2023
    %v2025 = vand.u32 %v256, 4294901760
    %2026 = vmatmul.mubr.f32.gmra.mrb[0].mxu0 %v2025
    %v2027 = vpop.f32.mrb[0].mxu0
    %v2028 = vadd.f32 %v1887, %v2027
    %v2029 = vpop.f32.mrb[0].mxu0
    %2030 = vdwg.mxu0
    %2031 = vmatprep.subr.mxu0 0.0
    %v2032 = vand.u32 %v260, 4294901760
    %2033 = vmatpush1.msra.mxu0 %v2032
    %2034 = vmatprep.subr.mxu0 0.0
    %v2035 = vand.u32 %v263, 4294901760
    %2036 = vmatpush1.msra.mxu0 %v2035
    %2037 = vmatprep.subr.mxu0 0.0
    %v2038 = vand.u32 %v266, 4294901760
    %2039 = vmatpush1.msra.mxu0 %v2038
    %2040 = vmatprep.subr.mxu0 0.0
    %v2041 = vand.u32 %v269, 4294901760
    %2042 = vmatpush1.msra.mxu0 %v2041
    %2043 = vmatprep.subr.mxu0 0.0
    %v2044 = vand.u32 %v272, 4294901760
    %2045 = vmatpush1.msra.mxu0 %v2044
    %2046 = vmatprep.subr.mxu0 0.0
    %v2047 = vand.u32 %v275, 4294901760
    %2048 = vmatpush1.msra.mxu0 %v2047
    %2049 = vmatprep.subr.mxu0 0.0
    %v2050 = vand.u32 %v278, 4294901760
    %2051 = vmatpush1.msra.mxu0 %v2050
    %2052 = vmatprep.subr.mxu0 0.0
    %v2053 = vand.u32 %v281, 4294901760
    %2054 = vmatpush1.msra.mxu0 %v2053
    %2055 = vmatprep.subr.mxu0 0.0
    %v2056 = vand.u32 %v284, 4294901760
    %2057 = vmatpush1.msra.mxu0 %v2056
    %2058 = vmatprep.subr.mxu0 0.0
    %v2059 = vand.u32 %v287, 4294901760
    %2060 = vmatpush1.msra.mxu0 %v2059
    %2061 = vmatprep.subr.mxu0 0.0
    %v2062 = vand.u32 %v290, 4294901760
    %2063 = vmatpush1.msra.mxu0 %v2062
    %2064 = vmatprep.subr.mxu0 0.0
    %v2065 = vand.u32 %v293, 4294901760
    %2066 = vmatpush1.msra.mxu0 %v2065
    %2067 = vmatprep.subr.mxu0 0.0
    %v2068 = vand.u32 %v296, 4294901760
    %2069 = vmatpush1.msra.mxu0 %v2068
    %2070 = vmatprep.subr.mxu0 0.0
    %v2071 = vand.u32 %v299, 4294901760
    %2072 = vmatpush1.msra.mxu0 %v2071
    %2073 = vmatprep.subr.mxu0 0.0
    %v2074 = vand.u32 %v302, 4294901760
    %2075 = vmatpush1.msra.mxu0 %v2074
    %2076 = vmatprep.subr.mxu0 0.0
    %v2077 = vand.u32 %v305, 4294901760
    %2078 = vmatpush1.msra.mxu0 %v2077
    %2079 = vmatprep.subr.mxu0 0.0
    %v2080 = vand.u32 %v308, 4294901760
    %2081 = vmatpush1.msra.mxu0 %v2080
    %2082 = vmatprep.subr.mxu0 0.0
    %v2083 = vand.u32 %v311, 4294901760
    %2084 = vmatpush1.msra.mxu0 %v2083
    %2085 = vmatprep.subr.mxu0 0.0
    %v2086 = vand.u32 %v314, 4294901760
    %2087 = vmatpush1.msra.mxu0 %v2086
    %2088 = vmatprep.subr.mxu0 0.0
    %v2089 = vand.u32 %v317, 4294901760
    %2090 = vmatpush1.msra.mxu0 %v2089
    %2091 = vmatprep.subr.mxu0 0.0
    %v2092 = vand.u32 %v320, 4294901760
    %2093 = vmatpush1.msra.mxu0 %v2092
    %2094 = vmatprep.subr.mxu0 0.0
    %v2095 = vand.u32 %v323, 4294901760
    %2096 = vmatpush1.msra.mxu0 %v2095
    %2097 = vmatprep.subr.mxu0 0.0
    %v2098 = vand.u32 %v326, 4294901760
    %2099 = vmatpush1.msra.mxu0 %v2098
    %2100 = vmatprep.subr.mxu0 0.0
    %2101 = vmatpush1.msra.mxu0 0.0
    %2102 = vmatprep.subr.mxu0 0.0
    %2103 = vmatpush1.msra.mxu0 0.0
    %2104 = vmatprep.subr.mxu0 0.0
    %2105 = vmatpush1.msra.mxu0 0.0
    %2106 = vmatprep.subr.mxu0 0.0
    %2107 = vmatpush1.msra.mxu0 0.0
    %2108 = vmatprep.subr.mxu0 0.0
    %2109 = vmatpush1.msra.mxu0 0.0
    %2110 = vmatprep.subr.mxu0 0.0
    %2111 = vmatpush1.msra.mxu0 0.0
    %2112 = vmatprep.subr.mxu0 0.0
    %2113 = vmatpush1.msra.mxu0 0.0
    %2114 = vmatprep.subr.mxu0 0.0
    %2115 = vmatpush1.msra.mxu0 0.0
    %2116 = vmatprep.subr.mxu0 0.0
    %2117 = vmatpush1.msra.mxu0 0.0
    %v2118 = vand.u32 %v329, 4294901760
    %2119 = vmatprep.mubr.f32.mxu0 %v2118
    %v2120 = vand.u32 %v256, 4294901760
    %2121 = vmatmul.mubr.f32.gmra.mrb[0].mxu0 %v2120
    %v2122 = vpop.f32.mrb[0].mxu0
    %v2123 = vadd.f32 %v2028, %v2122
    %v2124 = vpop.f32.mrb[0].mxu0
    %2125 = vdwg.mxu0
    %2126 = vst [vmem:[#allocation7] sm:$0xff] %v1377
    %2127 = vst [vmem:[#allocation7 + $0x8] sm:$0xff] %v1379
    %2128 = vst [vmem:[#allocation7 + $0x10] sm:$0xff] %v2123
    // Predicated region
    $region18: #{tpu_custom_call.1} parent=1 // pred_check
      _
    $region19: #{tpu_custom_call.1} parent=1 // pred_check_branch
      %2130 = sbr.rel (0) target = $region21
    $region20: #{tpu_custom_call.1} parent=1 // pred_region
      %s2132 = ssub.s32 384, 384
      %2133 = vsyncadd [#allocation4], %s2132
      %s2135 = sshll.u32 [#allocation7], 4
      %s2136 = int_to_ptr.vmem [resolvable:$true] %s2135
      %2138 = dma.vmem_to_hbm [thread:$0]  %s2136, 384, %s2, [#allocation4]
    $region21: #{tpu_custom_call.1} parent=1 // pred_fallthru
      _
    // Predicated region
    $region22: #{tpu_custom_call.1} parent=1 // pred_check
      _
    $region23: #{tpu_custom_call.1} parent=1 // pred_check_branch
      %2140 = sbr.rel (0) target = $region25
    $region24: #{tpu_custom_call.1} parent=1 // pred_region
      %2141 = dma.done [#allocation4], 384
    $region25: #{tpu_custom_call.1} parent=1 // pred_fallthru
      _
    %2142 = vsyncpa [#allocation3], 1
    %2143 = vsyncpa [#allocation6], 1
    %2144 = vsyncpa [#allocation4], 1

</llo_original>
